<compile_context>
chip_gen: v6e
topology: v6e:2x2x1
jax: 0.10.0
libtpu: 0.0.40
codegen_flags: <defaults>
</compile_context>

<pallas_src>
import functools

import numpy as np
import jax
import jax.numpy as jnp
from jax import lax
from jax.experimental import pallas as pl
from jax.experimental.pallas import tpu as pltpu


# ---------------------------------- helpers --------------------------------------
def _round_up(x, m):
    return ((x + m - 1) // m) * m


def _pick_tile(n, pref, mult):
    """Tile size (multiple of `mult`, at most `pref`) and padded extent (multiple of tile)."""
    t = min(pref, _round_up(n, mult))
    return t, _round_up(n, t)


_VMEM_LIMIT = 32 * 1024 * 1024  # explicit scoped-VMEM budget (portable down to v7x)


# ------------------------- Kernel 1: fused Linear + ReLU -------------------------
def _mlp_kernel(x_ref, w_ref, b_ref, y_ref):
    y = jnp.dot(x_ref[...], w_ref[...], preferred_element_type=jnp.float32)
    y_ref[...] = jnp.maximum(y + b_ref[...], 0.0).astype(y_ref.dtype)


def mlp_relu(x_flat, w_pad, b_pad, *, tm_pref=512):
    """relu(x @ w + b). Returns (M_pad, d_out_pad); rows >= M are padding (never read)."""
    M, d_in = x_flat.shape
    d_out_pad = w_pad.shape[1]
    tm, M_pad = _pick_tile(M, tm_pref, 8)
    if M_pad != M:
        x_flat = jnp.pad(x_flat, ((0, M_pad - M), (0, 0)))
    b2 = b_pad.reshape(1, d_out_pad)
    return pl.pallas_call(
        _mlp_kernel,
        out_shape=jax.ShapeDtypeStruct((M_pad, d_out_pad), jnp.float32),
        grid_spec=pltpu.PrefetchScalarGridSpec(
            num_scalar_prefetch=0,
            grid=(M_pad // tm,),
            in_specs=[
                pl.BlockSpec((tm, d_in), lambda i: (i, 0)),
                pl.BlockSpec((d_in, d_out_pad), lambda i: (0, 0)),  # grid-invariant
                pl.BlockSpec((1, d_out_pad), lambda i: (0, 0)),     # grid-invariant
            ],
            out_specs=pl.BlockSpec((tm, d_out_pad), lambda i: (i, 0)),
        ),
        compiler_params=pltpu.CompilerParams(
            dimension_semantics=("parallel",),
            vmem_limit_bytes=_VMEM_LIMIT),
    )(x_flat, w_pad, b2)


# ------------- Kernel 2: fused pairwise distances + running top-k (kNN) ----------
def _knn_kernel(ps_ref, pt_ref, idx_ref, bd_ref, bi_ref, *, n_real, n_pad, tn, k):
    j = pl.program_id(2)
    tm = bd_ref.shape[0]

    @pl.when(j == 0)
    def _init():
        bd_ref[...] = jnp.full((tm, k), jnp.inf, jnp.float32)
        # Unique sentinel indices; never selected while >= k finite candidates exist.
        bi_ref[...] = n_pad + lax.broadcasted_iota(jnp.int32, (tm, k), 1)

    ps = ps_ref[0]                                    # (tm, 8) query coords (zero-padded)
    pT = pt_ref[0]                                    # (8, tn) point coords, transposed
    cross = jnp.dot(ps, pT, preferred_element_type=jnp.float32)   # MXU (tm, tn)
    ps2 = jnp.sum(ps * ps, axis=-1, keepdims=True)                # (tm, 1)
    p2 = jnp.sum(pT * pT, axis=0, keepdims=True)                  # (1, tn)
    d2 = ps2 + p2 - 2.0 * cross                                   # (tm, tn)

    col_i = j * tn + lax.broadcasted_iota(jnp.int32, (tm, tn), 1)
    col_f = col_i.astype(jnp.float32)   # NOTE: index-as-f32 trick requires N < 2^24
    d2 = jnp.where(col_i < n_real, d2, jnp.inf)       # mask padded columns

    run_d = bd_ref[...]                               # running k-best distances
    run_i_f = bi_ref[...].astype(jnp.float32)         # running k-best indices (as f32)

    lane = lax.broadcasted_iota(jnp.int32, (tm, k), 1)
    new_d = jnp.zeros((tm, k), jnp.float32)
    new_i = jnp.zeros((tm, k), jnp.float32)
    BIGF = jnp.float32(1e30)

    for t in range(k):  # static unroll: merge running k-best with this distance tile
        m_run = jnp.min(run_d, axis=-1, keepdims=True)
        m_til = jnp.min(d2, axis=-1, keepdims=True)
        take_run = m_run <= m_til
        i_run = jnp.min(jnp.where(run_d == m_run, run_i_f, BIGF), axis=-1, keepdims=True)
        i_til = jnp.min(jnp.where(d2 == m_til, col_f, BIGF), axis=-1, keepdims=True)
        sel_d = jnp.minimum(m_run, m_til)
        sel_i = jnp.where(take_run, i_run, i_til)
        # drop the selected candidate from its source so it is not picked twice
        run_d = jnp.where(take_run & (run_i_f == i_run), jnp.inf, run_d)
        d2 = jnp.where(jnp.logical_not(take_run) & (col_f == i_til), jnp.inf, d2)
        new_d = jnp.where(lane == t, sel_d, new_d)
        new_i = jnp.where(lane == t, sel_i, new_i)

    bd_ref[...] = new_d
    bi_ref[...] = new_i.astype(jnp.int32)

    @pl.when(j == pl.num_programs(2) - 1)
    def _write():
        idx_ref[0] = bi_ref[...]


def knn_topk(p_sub, p, k, *, tm_pref=128, tn_pref=512):
    """Per-batch kNN indices of p_sub's points among p's points: (B, N_new, k) int32."""
    B, N_new, _ = p_sub.shape
    _, N, _ = p.shape
    tm, Nn_pad = _pick_tile(N_new, tm_pref, 8)
    tn, N_pad = _pick_tile(N, tn_pref, 128)

    # Pad coordinate (contraction) dim 3 -> 8, and point axes up to the tile grid.
    ps = jnp.pad(p_sub, ((0, 0), (0, Nn_pad - N_new), (0, 5)))              # (B, Nn_pad, 8)
    pt = jnp.pad(jnp.swapaxes(p, 1, 2), ((0, 0), (0, 5), (0, N_pad - N)))   # (B, 8, N_pad)

    kernel = functools.partial(_knn_kernel, n_real=N, n_pad=N_pad, tn=tn, k=k)
    idx = pl.pallas_call(
        kernel,
        out_shape=jax.ShapeDtypeStruct((B, Nn_pad, k), jnp.int32),
        grid_spec=pltpu.PrefetchScalarGridSpec(
            num_scalar_prefetch=0,
            grid=(B, Nn_pad // tm, N_pad // tn),
            in_specs=[
                pl.BlockSpec((1, tm, 8), lambda b, i, j: (b, i, 0)),
                pl.BlockSpec((1, 8, tn), lambda b, i, j: (b, 0, j)),
            ],
            out_specs=pl.BlockSpec((1, tm, k), lambda b, i, j: (b, i, 0)),
            scratch_shapes=[pltpu.VMEM((tm, k), jnp.float32),
                            pltpu.VMEM((tm, k), jnp.int32)],
        ),
        compiler_params=pltpu.CompilerParams(
            dimension_semantics=("parallel", "parallel", "arbitrary"),
            vmem_limit_bytes=_VMEM_LIMIT),
    )(ps, pt)
    return idx[:, :N_new, :]


# ----------------- Kernel 3: local max pooling over the k neighbors --------------
def _pool_kernel(y_ref, z_ref, *, k):
    z = y_ref[0]
    for t in range(1, k):
        z = jnp.maximum(z, y_ref[t])
    z_ref[...] = z


def knn_max_pool(y_gathered, *, tm_pref=256):
    """y_gathered: (k, M_new, d_out_pad) neighbor features. Returns (M_new, d_out_pad)."""
    k, Mn, d_out_pad = y_gathered.shape
    tm, Mn_pad = _pick_tile(Mn, tm_pref, 8)
    if Mn_pad != Mn:
        y_gathered = jnp.pad(y_gathered, ((0, 0), (0, Mn_pad - Mn), (0, 0)))
    out = pl.pallas_call(
        functools.partial(_pool_kernel, k=k),
        out_shape=jax.ShapeDtypeStruct((Mn_pad, d_out_pad), jnp.float32),
        grid_spec=pltpu.PrefetchScalarGridSpec(
            num_scalar_prefetch=0,
            grid=(Mn_pad // tm,),
            in_specs=[pl.BlockSpec((k, tm, d_out_pad), lambda i: (0, i, 0))],
            out_specs=pl.BlockSpec((tm, d_out_pad), lambda i: (i, 0)),
        ),
        compiler_params=pltpu.CompilerParams(
            dimension_semantics=("parallel",),
            vmem_limit_bytes=_VMEM_LIMIT),
    )(y_gathered)
    return out[:Mn]


# ------------------------- plain-JAX glue: FPS sampling --------------------------
def fps_batch(p, n_sample):
    # TODO(synk): torch_cluster.fps(random_start=True) uses a random start point; we use
    # a deterministic start at index 0 (equivalent to fps_random_start=False inference).
    def one(points):
        N = points.shape[0]

        def body(i, carry):
            min_d, sel = carry
            last = sel[i - 1]
            d = jnp.sum((points - points[last]) ** 2, axis=-1)
            min_d = jnp.minimum(min_d, d)
            nxt = jnp.argmax(min_d).astype(jnp.int32)
            return min_d, sel.at[i].set(nxt)

        min_d0 = jnp.full((N,), jnp.inf, jnp.float32)
        sel0 = jnp.zeros((n_sample,), jnp.int32)
        _, sel = lax.fori_loop(1, n_sample, body, (min_d0, sel0))
        return jnp.sort(sel)  # module sorts the FPS indices

    return jax.vmap(one)(p)


# ------------------------------- module forward ----------------------------------
def down_transition(x, p, w, b, *, factor=2, knn_k=8):
    """Forward pass of DownTransition (norm_type='none'). Returns (z, p_sub, knn_idx)."""
    # TODO(synk): norm_type='batch'/'layer' (BatchNorm/LayerNorm after the Linear) not implemented.
    assert x.shape[:2] == p.shape[:2]
    B, N, d_in = x.shape
    d_out = w.shape[1]
    N_new = int(np.ceil(N / factor))
    assert N >= knn_k

    # Farthest point sampling (sequential, data-dependent -> plain JAX).
    sub_idx = fps_batch(p, N_new)                                   # (B, N_new)
    p_sub = jnp.take_along_axis(p, sub_idx[..., None], axis=1)      # (B, N_new, 3)

    # Fused distances + top-k: only (B, N_new, k) indices ever hit HBM.
    knn_local = knn_topk(p_sub, p, knn_k)                           # (B, N_new, k)

    # Per-point MLP on all points, lane-dense padded feature dim.
    d_out_pad = _round_up(d_out, 128)
    w_pad = jnp.pad(w, ((0, 0), (0, d_out_pad - d_out)))
    b_pad = jnp.pad(b, (0, d_out_pad - d_out))
    y_flat = mlp_relu(x.reshape(B * N, d_in), w_pad, b_pad)         # (M_pad, d_out_pad)

    # Neighbor gather (single XLA take, neighbor-major layout) + Pallas max pool over k.
    offs = (jnp.arange(B, dtype=jnp.int32) * N)[:, None, None]
    flat_idx = jnp.moveaxis(knn_local + offs, -1, 0).reshape(knn_k * B * N_new)
    y_g = jnp.take(y_flat, flat_idx, axis=0).reshape(knn_k, B * N_new, d_out_pad)
    z_flat = knn_max_pool(y_g)                                      # (B*N_new, d_out_pad)

    z = z_flat[:, :d_out].reshape(B, N_new, d_out)
    return z, p_sub, knn_local


if __name__ == "__main__":
    B, N, d_in, d_out = 2, 16, 8, 32
    factor, knn_k = 2, 8

    key = jax.random.PRNGKey(0)
    kx, kp, kw, kb = jax.random.split(key, 4)
    x = jax.random.normal(kx, (B, N, d_in), jnp.float32)
    p = jax.random.normal(kp, (B, N, 3), jnp.float32)
    # Deterministic Linear(d_in, d_out) parameters (PyTorch-style uniform init).
    lim = 1.0 / float(np.sqrt(d_in))
    w = jax.random.uniform(kw, (d_in, d_out), jnp.float32, -lim, lim)
    bias = jax.random.uniform(kb, (d_out,), jnp.float32, -lim, lim)

    fwd = jax.jit(functools.partial(down_transition, factor=factor, knn_k=knn_k))
    z, p_sub, knn_local = fwd(x, p, w, bias)
    jax.block_until_ready((z, p_sub, knn_local))

    N_new = int(np.ceil(N / factor))
    assert z.shape == (B, N_new, d_out)
    assert p_sub.shape == (B, N_new, 3)
    assert knn_local.shape == (B, N_new, knn_k)

    # kNN check: distances at kernel-selected indices must match the exact top-k set.
    d2_ref = jnp.sum((p_sub[:, :, None, :] - p[:, None, :, :]) ** 2, axis=-1)  # (B,N_new,N)
    ref_vals = jnp.sort(-lax.top_k(-d2_ref, knn_k)[0], axis=-1)
    got_vals = jnp.sort(jnp.take_along_axis(d2_ref, knn_local, axis=-1), axis=-1)
    np.testing.assert_allclose(np.asarray(got_vals), np.asarray(ref_vals),
                               rtol=1e-4, atol=1e-4)

    # MLP + gather + max-pool check using the kernel-produced kNN indices
    # (avoids distance-tie ambiguity).
    y_ref = jnp.maximum(x.reshape(B * N, d_in) @ w + bias, 0.0)
    flat_idx = (knn_local + jnp.arange(B)[:, None, None] * N).reshape(-1)
    z_ref = y_ref[flat_idx].reshape(B, N_new, knn_k, d_out).max(axis=2)
    np.testing.assert_allclose(np.asarray(z), np.asarray(z_ref), rtol=1e-5, atol=1e-5)

    print("KERNEL_OK")
</pallas_src>

<mosaic_0001>
module attributes {stable_mosaic.version = 11 : i64} {
  func.func @_mlp_kernel(%arg0: i32, %arg1: memref<32x8xf32, #tpu.memory_space<vmem>>, %arg2: memref<8x128xf32, #tpu.memory_space<vmem>>, %arg3: memref<1x128xf32, #tpu.memory_space<vmem>>, %arg4: memref<32x128xf32, #tpu.memory_space<vmem>>) attributes {dimension_semantics = [#tpu.dimension_semantics<parallel>], iteration_bounds = array<i64: 1>, scalar_prefetch = 0 : i64, scratch_operands = 0 : i64, tpu.core_type = #tpu.core_type<tc>, window_params = [{transform_indices = @transform_0, window_bounds = array<i64: 32, 8>}, {pipeline_mode = #tpu.pipeline_mode<synchronous>, transform_indices = @transform_1, window_bounds = array<i64: 8, 128>}, {pipeline_mode = #tpu.pipeline_mode<synchronous>, transform_indices = @transform_2, window_bounds = array<i64: 1, 128>}, {transform_indices = @transform_3, window_bounds = array<i64: 32, 128>}]} {
    %c0 = arith.constant 0 : index
    %c0_0 = arith.constant 0 : index
    %0 = vector.load %arg1[%c0, %c0_0] : memref<32x8xf32, #tpu.memory_space<vmem>>, vector<32x8xf32>
    %c0_1 = arith.constant 0 : index
    %c0_2 = arith.constant 0 : index
    %1 = vector.load %arg2[%c0_1, %c0_2] : memref<8x128xf32, #tpu.memory_space<vmem>>, vector<8x128xf32>
    %cst = arith.constant dense<0.000000e+00> : vector<32x128xf32>
    %2 = tpu.matmul %0, %1, %cst {dimension_numbers = #tpu.dot_dimension_numbers<[1], [0], [0], [1], [0, 0, 1, 1], [], []>} : vector<32x8xf32>, vector<8x128xf32>, vector<32x128xf32> -> vector<32x128xf32>
    %c0_3 = arith.constant 0 : index
    %c0_4 = arith.constant 0 : index
    %3 = vector.load %arg3[%c0_3, %c0_4] : memref<1x128xf32, #tpu.memory_space<vmem>>, vector<1x128xf32>
    %4 = vector.broadcast %3 : vector<1x128xf32> to vector<32x128xf32>
    %5 = arith.addf %2, %4 : vector<32x128xf32>
    %cst_5 = arith.constant 0.000000e+00 : f32
    %6 = vector.broadcast %cst_5 : f32 to vector<32x128xf32>
    %7 = arith.maximumf %5, %6 : vector<32x128xf32>
    %c0_6 = arith.constant 0 : index
    %c0_7 = arith.constant 0 : index
    %8 = vector.load %arg4[%c0_6, %c0_7] : memref<32x128xf32, #tpu.memory_space<vmem>>, vector<32x128xf32>
    tpu.vector_store %arg4[%c0_6, %c0_7], %7 {strides = array<i32>} : memref<32x128xf32, #tpu.memory_space<vmem>>, vector<32x128xf32>,
    return
  }
  func.func @transform_0(%arg0: i32) -> (i32, i32) {
    %c0_i32 = arith.constant 0 : i32
    %c0_i32_0 = arith.constant 0 : i32
    return %arg0, %c0_i32 : i32, i32
  }
  func.func @transform_1(%arg0: i32) -> (i32, i32) {
    %c0_i32 = arith.constant 0 : i32
    %c0_i32_0 = arith.constant 0 : i32
    %c0_i32_1 = arith.constant 0 : i32
    return %c0_i32, %c0_i32_0 : i32, i32
  }
  func.func @transform_2(%arg0: i32) -> (i32, i32) {
    %c0_i32 = arith.constant 0 : i32
    %c0_i32_0 = arith.constant 0 : i32
    %c0_i32_1 = arith.constant 0 : i32
    return %c0_i32, %c0_i32_0 : i32, i32
  }
  func.func @transform_3(%arg0: i32) -> (i32, i32) {
    %c0_i32 = arith.constant 0 : i32
    %c0_i32_0 = arith.constant 0 : i32
    return %arg0, %c0_i32 : i32, i32
  }
}

module attributes {stable_mosaic.version = 11 : i64} {
  func.func @_knn_kernel(%arg0: i32, %arg1: i32, %arg2: i32, %arg3: memref<1x8x8xf32, #tpu.memory_space<vmem>>, %arg4: memref<1x8x128xf32, #tpu.memory_space<vmem>>, %arg5: memref<1x8x8xi32, #tpu.memory_space<vmem>>, %arg6: memref<8x8xf32, #tpu.memory_space<vmem>>, %arg7: memref<8x8xi32, #tpu.memory_space<vmem>>) attributes {dimension_semantics = [#tpu.dimension_semantics<parallel>, #tpu.dimension_semantics<parallel>, #tpu.dimension_semantics<arbitrary>], iteration_bounds = array<i64: 2, 1, 1>, scalar_prefetch = 0 : i64, scratch_operands = 2 : i64, tpu.core_type = #tpu.core_type<tc>, window_params = [{transform_indices = @transform_0, window_bounds = array<i64: 1, 8, 8>}, {transform_indices = @transform_1, window_bounds = array<i64: 1, 8, 128>}, {transform_indices = @transform_2, window_bounds = array<i64: 1, 8, 8>}]} {
    %c0_i32 = arith.constant 0 : i32
    %0 = arith.cmpi eq, %arg2, %c0_i32 : i32
    %1 = arith.extui %0 : i1 to i32
    %c0_i32_0 = arith.constant 0 : i32
    %2 = arith.cmpi ne, %1, %c0_i32_0 : i32
    scf.if %2 {
      %cst_100 = arith.constant 0x7F800000 : f32
      %364 = vector.broadcast %cst_100 : f32 to vector<8x8xf32>
      %c0_101 = arith.constant 0 : index
      %c0_102 = arith.constant 0 : index
      %365 = vector.load %arg6[%c0_101, %c0_102] : memref<8x8xf32, #tpu.memory_space<vmem>>, vector<8x8xf32>
      tpu.vector_store %arg6[%c0_101, %c0_102], %364 {strides = array<i32>} : memref<8x8xf32, #tpu.memory_space<vmem>>, vector<8x8xf32>,
      %366 = tpu.iota {dimensions = array<i32: 1>} : vector<8x8xi32>
      %c128_i32_103 = arith.constant 128 : i32
      %367 = vector.broadcast %c128_i32_103 : i32 to vector<8x8xi32>
      %368 = arith.addi %367, %366 : vector<8x8xi32>
      %c0_104 = arith.constant 0 : index
      %c0_105 = arith.constant 0 : index
      %369 = vector.load %arg7[%c0_104, %c0_105] : memref<8x8xi32, #tpu.memory_space<vmem>>, vector<8x8xi32>
      tpu.vector_store %arg7[%c0_104, %c0_105], %368 {strides = array<i32>} : memref<8x8xi32, #tpu.memory_space<vmem>>, vector<8x8xi32>,
    } else {
    }
    %c0 = arith.constant 0 : index
    %c0_1 = arith.constant 0 : index
    %c0_2 = arith.constant 0 : index
    %3 = vector.load %arg3[%c0, %c0_1, %c0_2] : memref<1x8x8xf32, #tpu.memory_space<vmem>>, vector<1x8x8xf32>
    %4 = vector.shape_cast %3 : vector<1x8x8xf32> to vector<8x8xf32>
    %c0_3 = arith.constant 0 : index
    %c0_4 = arith.constant 0 : index
    %c0_5 = arith.constant 0 : index
    %5 = vector.load %arg4[%c0_3, %c0_4, %c0_5] : memref<1x8x128xf32, #tpu.memory_space<vmem>>, vector<1x8x128xf32>
    %6 = vector.shape_cast %5 : vector<1x8x128xf32> to vector<8x128xf32>
    %cst = arith.constant dense<0.000000e+00> : vector<8x128xf32>
    %7 = tpu.matmul %4, %6, %cst {dimension_numbers = #tpu.dot_dimension_numbers<[1], [0], [0], [1], [0, 0, 1, 1], [], []>} : vector<8x8xf32>, vector<8x128xf32>, vector<8x128xf32> -> vector<8x128xf32>
    %8 = arith.mulf %4, %4 : vector<8x8xf32>
    %cst_6 = arith.constant dense<0.000000e+00> : vector<8xf32>
    %9 = vector.multi_reduction <add>, %8, %cst_6 [1] : vector<8x8xf32> to vector<8xf32>
    %10 = vector.shape_cast %9 : vector<8xf32> to vector<8x1xf32>
    %11 = arith.mulf %6, %6 : vector<8x128xf32>
    %cst_7 = arith.constant dense<0.000000e+00> : vector<128xf32>
    %12 = vector.multi_reduction <add>, %11, %cst_7 [0] : vector<8x128xf32> to vector<128xf32>
    %13 = vector.shape_cast %12 : vector<128xf32> to vector<1x128xf32>
    %14 = vector.broadcast %10 : vector<8x1xf32> to vector<8x128xf32>
    %15 = vector.broadcast %13 : vector<1x128xf32> to vector<8x128xf32>
    %16 = arith.addf %14, %15 : vector<8x128xf32>
    %cst_8 = arith.constant 2.000000e+00 : f32
    %17 = vector.broadcast %cst_8 : f32 to vector<8x128xf32>
    %18 = arith.mulf %17, %7 : vector<8x128xf32>
    %19 = arith.subf %16, %18 : vector<8x128xf32>
    %c128_i32 = arith.constant 128 : i32
    %20 = arith.muli %arg2, %c128_i32 : i32
    %21 = tpu.iota {dimensions = array<i32: 1>} : vector<8x128xi32>
    %22 = vector.broadcast %20 : i32 to vector<8x128xi32>
    %23 = arith.addi %22, %21 : vector<8x128xi32>
    %24 = arith.sitofp %23 : vector<8x128xi32> to vector<8x128xf32>
    %c16_i32 = arith.constant 16 : i32
    %25 = vector.broadcast %c16_i32 : i32 to vector<8x128xi32>
    %26 = arith.cmpi slt, %23, %25 : vector<8x128xi32>
    %cst_9 = arith.constant 0x7F800000 : f32
    %27 = vector.broadcast %cst_9 : f32 to vector<8x128xf32>
    %28 = arith.select %26, %19, %27 : vector<8x128xi1>, vector<8x128xf32>
    %c0_10 = arith.constant 0 : index
    %c0_11 = arith.constant 0 : index
    %29 = vector.load %arg6[%c0_10, %c0_11] : memref<8x8xf32, #tpu.memory_space<vmem>>, vector<8x8xf32>
    %c0_12 = arith.constant 0 : index
    %c0_13 = arith.constant 0 : index
    %30 = vector.load %arg7[%c0_12, %c0_13] : memref<8x8xi32, #tpu.memory_space<vmem>>, vector<8x8xi32>
    %31 = arith.sitofp %30 : vector<8x8xi32> to vector<8x8xf32>
    %32 = tpu.iota {dimensions = array<i32: 1>} : vector<8x8xi32>
    %cst_14 = arith.constant 0.000000e+00 : f32
    %33 = vector.broadcast %cst_14 : f32 to vector<8x8xf32>
    %cst_15 = arith.constant 0.000000e+00 : f32
    %34 = vector.broadcast %cst_15 : f32 to vector<8x8xf32>
    %cst_16 = arith.constant dense<0x7F800000> : vector<8xf32>
    %35 = vector.multi_reduction <minimumf>, %29, %cst_16 [1] : vector<8x8xf32> to vector<8xf32>
    %36 = vector.shape_cast %35 : vector<8xf32> to vector<8x1xf32>
    %cst_17 = arith.constant dense<0x7F800000> : vector<8xf32>
    %37 = vector.multi_reduction <minimumf>, %28, %cst_17 [1] : vector<8x128xf32> to vector<8xf32>
    %38 = vector.shape_cast %37 : vector<8xf32> to vector<8x1xf32>
    %39 = arith.cmpf ole, %36, %38 : vector<8x1xf32>
    %40 = vector.broadcast %36 : vector<8x1xf32> to vector<8x8xf32>
    %41 = arith.cmpf oeq, %29, %40 : vector<8x8xf32>
    %cst_18 = arith.constant 1.000000e+30 : f32
    %42 = vector.broadcast %cst_18 : f32 to vector<8x8xf32>
    %43 = arith.select %41, %31, %42 : vector<8x8xi1>, vector<8x8xf32>
    %cst_19 = arith.constant dense<0x7F800000> : vector<8xf32>
    %44 = vector.multi_reduction <minimumf>, %43, %cst_19 [1] : vector<8x8xf32> to vector<8xf32>
    %45 = vector.shape_cast %44 : vector<8xf32> to vector<8x1xf32>
    %46 = vector.broadcast %38 : vector<8x1xf32> to vector<8x128xf32>
    %47 = arith.cmpf oeq, %28, %46 : vector<8x128xf32>
    %cst_20 = arith.constant 1.000000e+30 : f32
    %48 = vector.broadcast %cst_20 : f32 to vector<8x128xf32>
    %49 = arith.select %47, %24, %48 : vector<8x128xi1>, vector<8x128xf32>
    %cst_21 = arith.constant dense<0x7F800000> : vector<8xf32>
    %50 = vector.multi_reduction <minimumf>, %49, %cst_21 [1] : vector<8x128xf32> to vector<8xf32>
    %51 = vector.shape_cast %50 : vector<8xf32> to vector<8x1xf32>
    %52 = arith.minimumf %36, %38 : vector<8x1xf32>
    %53 = arith.select %39, %45, %51 : vector<8x1xi1>, vector<8x1xf32>
    %54 = vector.broadcast %45 : vector<8x1xf32> to vector<8x8xf32>
    %55 = arith.cmpf oeq, %31, %54 : vector<8x8xf32>
    %56 = vector.broadcast %39 : vector<8x1xi1> to vector<8x8xi1>
    %57 = arith.andi %56, %55 : vector<8x8xi1>
    %cst_22 = arith.constant 0x7F800000 : f32
    %58 = vector.broadcast %cst_22 : f32 to vector<8x8xf32>
    %59 = arith.select %57, %58, %29 : vector<8x8xi1>, vector<8x8xf32>
    %cst_23 = arith.constant dense<true> : vector<8x1xi1>
    %60 = arith.xori %39, %cst_23 : vector<8x1xi1>
    %61 = vector.broadcast %51 : vector<8x1xf32> to vector<8x128xf32>
    %62 = arith.cmpf oeq, %24, %61 : vector<8x128xf32>
    %63 = vector.broadcast %60 : vector<8x1xi1> to vector<8x128xi1>
    %64 = arith.andi %63, %62 : vector<8x128xi1>
    %cst_24 = arith.constant 0x7F800000 : f32
    %65 = vector.broadcast %cst_24 : f32 to vector<8x128xf32>
    %66 = arith.select %64, %65, %28 : vector<8x128xi1>, vector<8x128xf32>
    %c0_i32_25 = arith.constant 0 : i32
    %67 = vector.broadcast %c0_i32_25 : i32 to vector<8x8xi32>
    %68 = arith.cmpi eq, %32, %67 : vector<8x8xi32>
    %69 = vector.shape_cast %52 : vector<8x1xf32> to vector<8x1xf32>
    %70 = vector.broadcast %69 : vector<8x1xf32> to vector<8x8xf32>
    %71 = arith.select %68, %70, %33 : vector<8x8xi1>, vector<8x8xf32>
    %c0_i32_26 = arith.constant 0 : i32
    %72 = vector.broadcast %c0_i32_26 : i32 to vector<8x8xi32>
    %73 = arith.cmpi eq, %32, %72 : vector<8x8xi32>
    %74 = vector.shape_cast %53 : vector<8x1xf32> to vector<8x1xf32>
    %75 = vector.broadcast %74 : vector<8x1xf32> to vector<8x8xf32>
    %76 = arith.select %73, %75, %34 : vector<8x8xi1>, vector<8x8xf32>
    %cst_27 = arith.constant dense<0x7F800000> : vector<8xf32>
    %77 = vector.multi_reduction <minimumf>, %59, %cst_27 [1] : vector<8x8xf32> to vector<8xf32>
    %78 = vector.shape_cast %77 : vector<8xf32> to vector<8x1xf32>
    %cst_28 = arith.constant dense<0x7F800000> : vector<8xf32>
    %79 = vector.multi_reduction <minimumf>, %66, %cst_28 [1] : vector<8x128xf32> to vector<8xf32>
    %80 = vector.shape_cast %79 : vector<8xf32> to vector<8x1xf32>
    %81 = arith.cmpf ole, %78, %80 : vector<8x1xf32>
    %82 = vector.broadcast %78 : vector<8x1xf32> to vector<8x8xf32>
    %83 = arith.cmpf oeq, %59, %82 : vector<8x8xf32>
    %cst_29 = arith.constant 1.000000e+30 : f32
    %84 = vector.broadcast %cst_29 : f32 to vector<8x8xf32>
    %85 = arith.select %83, %31, %84 : vector<8x8xi1>, vector<8x8xf32>
    %cst_30 = arith.constant dense<0x7F800000> : vector<8xf32>
    %86 = vector.multi_reduction <minimumf>, %85, %cst_30 [1] : vector<8x8xf32> to vector<8xf32>
    %87 = vector.shape_cast %86 : vector<8xf32> to vector<8x1xf32>
    %88 = vector.broadcast %80 : vector<8x1xf32> to vector<8x128xf32>
    %89 = arith.cmpf oeq, %66, %88 : vector<8x128xf32>
    %cst_31 = arith.constant 1.000000e+30 : f32
    %90 = vector.broadcast %cst_31 : f32 to vector<8x128xf32>
    %91 = arith.select %89, %24, %90 : vector<8x128xi1>, vector<8x128xf32>
    %cst_32 = arith.constant dense<0x7F800000> : vector<8xf32>
    %92 = vector.multi_reduction <minimumf>, %91, %cst_32 [1] : vector<8x128xf32> to vector<8xf32>
    %93 = vector.shape_cast %92 : vector<8xf32> to vector<8x1xf32>
    %94 = arith.minimumf %78, %80 : vector<8x1xf32>
    %95 = arith.select %81, %87, %93 : vector<8x1xi1>, vector<8x1xf32>
    %96 = vector.broadcast %87 : vector<8x1xf32> to vector<8x8xf32>
    %97 = arith.cmpf oeq, %31, %96 : vector<8x8xf32>
    %98 = vector.broadcast %81 : vector<8x1xi1> to vector<8x8xi1>
    %99 = arith.andi %98, %97 : vector<8x8xi1>
    %cst_33 = arith.constant 0x7F800000 : f32
    %100 = vector.broadcast %cst_33 : f32 to vector<8x8xf32>
    %101 = arith.select %99, %100, %59 : vector<8x8xi1>, vector<8x8xf32>
    %cst_34 = arith.constant dense<true> : vector<8x1xi1>
    %102 = arith.xori %81, %cst_34 : vector<8x1xi1>
    %103 = vector.broadcast %93 : vector<8x1xf32> to vector<8x128xf32>
    %104 = arith.cmpf oeq, %24, %103 : vector<8x128xf32>
    %105 = vector.broadcast %102 : vector<8x1xi1> to vector<8x128xi1>
    %106 = arith.andi %105, %104 : vector<8x128xi1>
    %cst_35 = arith.constant 0x7F800000 : f32
    %107 = vector.broadcast %cst_35 : f32 to vector<8x128xf32>
    %108 = arith.select %106, %107, %66 : vector<8x128xi1>, vector<8x128xf32>
    %c1_i32 = arith.constant 1 : i32
    %109 = vector.broadcast %c1_i32 : i32 to vector<8x8xi32>
    %110 = arith.cmpi eq, %32, %109 : vector<8x8xi32>
    %111 = vector.shape_cast %94 : vector<8x1xf32> to vector<8x1xf32>
    %112 = vector.broadcast %111 : vector<8x1xf32> to vector<8x8xf32>
    %113 = arith.select %110, %112, %71 : vector<8x8xi1>, vector<8x8xf32>
    %c1_i32_36 = arith.constant 1 : i32
    %114 = vector.broadcast %c1_i32_36 : i32 to vector<8x8xi32>
    %115 = arith.cmpi eq, %32, %114 : vector<8x8xi32>
    %116 = vector.shape_cast %95 : vector<8x1xf32> to vector<8x1xf32>
    %117 = vector.broadcast %116 : vector<8x1xf32> to vector<8x8xf32>
    %118 = arith.select %115, %117, %76 : vector<8x8xi1>, vector<8x8xf32>
    %cst_37 = arith.constant dense<0x7F800000> : vector<8xf32>
    %119 = vector.multi_reduction <minimumf>, %101, %cst_37 [1] : vector<8x8xf32> to vector<8xf32>
    %120 = vector.shape_cast %119 : vector<8xf32> to vector<8x1xf32>
    %cst_38 = arith.constant dense<0x7F800000> : vector<8xf32>
    %121 = vector.multi_reduction <minimumf>, %108, %cst_38 [1] : vector<8x128xf32> to vector<8xf32>
    %122 = vector.shape_cast %121 : vector<8xf32> to vector<8x1xf32>
    %123 = arith.cmpf ole, %120, %122 : vector<8x1xf32>
    %124 = vector.broadcast %120 : vector<8x1xf32> to vector<8x8xf32>
    %125 = arith.cmpf oeq, %101, %124 : vector<8x8xf32>
    %cst_39 = arith.constant 1.000000e+30 : f32
    %126 = vector.broadcast %cst_39 : f32 to vector<8x8xf32>
    %127 = arith.select %125, %31, %126 : vector<8x8xi1>, vector<8x8xf32>
    %cst_40 = arith.constant dense<0x7F800000> : vector<8xf32>
    %128 = vector.multi_reduction <minimumf>, %127, %cst_40 [1] : vector<8x8xf32> to vector<8xf32>
    %129 = vector.shape_cast %128 : vector<8xf32> to vector<8x1xf32>
    %130 = vector.broadcast %122 : vector<8x1xf32> to vector<8x128xf32>
    %131 = arith.cmpf oeq, %108, %130 : vector<8x128xf32>
    %cst_41 = arith.constant 1.000000e+30 : f32
    %132 = vector.broadcast %cst_41 : f32 to vector<8x128xf32>
    %133 = arith.select %131, %24, %132 : vector<8x128xi1>, vector<8x128xf32>
    %cst_42 = arith.constant dense<0x7F800000> : vector<8xf32>
    %134 = vector.multi_reduction <minimumf>, %133, %cst_42 [1] : vector<8x128xf32> to vector<8xf32>
    %135 = vector.shape_cast %134 : vector<8xf32> to vector<8x1xf32>
    %136 = arith.minimumf %120, %122 : vector<8x1xf32>
    %137 = arith.select %123, %129, %135 : vector<8x1xi1>, vector<8x1xf32>
    %138 = vector.broadcast %129 : vector<8x1xf32> to vector<8x8xf32>
    %139 = arith.cmpf oeq, %31, %138 : vector<8x8xf32>
    %140 = vector.broadcast %123 : vector<8x1xi1> to vector<8x8xi1>
    %141 = arith.andi %140, %139 : vector<8x8xi1>
    %cst_43 = arith.constant 0x7F800000 : f32
    %142 = vector.broadcast %cst_43 : f32 to vector<8x8xf32>
    %143 = arith.select %141, %142, %101 : vector<8x8xi1>, vector<8x8xf32>
    %cst_44 = arith.constant dense<true> : vector<8x1xi1>
    %144 = arith.xori %123, %cst_44 : vector<8x1xi1>
    %145 = vector.broadcast %135 : vector<8x1xf32> to vector<8x128xf32>
    %146 = arith.cmpf oeq, %24, %145 : vector<8x128xf32>
    %147 = vector.broadcast %144 : vector<8x1xi1> to vector<8x128xi1>
    %148 = arith.andi %147, %146 : vector<8x128xi1>
    %cst_45 = arith.constant 0x7F800000 : f32
    %149 = vector.broadcast %cst_45 : f32 to vector<8x128xf32>
    %150 = arith.select %148, %149, %108 : vector<8x128xi1>, vector<8x128xf32>
    %c2_i32 = arith.constant 2 : i32
    %151 = vector.broadcast %c2_i32 : i32 to vector<8x8xi32>
    %152 = arith.cmpi eq, %32, %151 : vector<8x8xi32>
    %153 = vector.shape_cast %136 : vector<8x1xf32> to vector<8x1xf32>
    %154 = vector.broadcast %153 : vector<8x1xf32> to vector<8x8xf32>
    %155 = arith.select %152, %154, %113 : vector<8x8xi1>, vector<8x8xf32>
    %c2_i32_46 = arith.constant 2 : i32
    %156 = vector.broadcast %c2_i32_46 : i32 to vector<8x8xi32>
    %157 = arith.cmpi eq, %32, %156 : vector<8x8xi32>
    %158 = vector.shape_cast %137 : vector<8x1xf32> to vector<8x1xf32>
    %159 = vector.broadcast %158 : vector<8x1xf32> to vector<8x8xf32>
    %160 = arith.select %157, %159, %118 : vector<8x8xi1>, vector<8x8xf32>
    %cst_47 = arith.constant dense<0x7F800000> : vector<8xf32>
    %161 = vector.multi_reduction <minimumf>, %143, %cst_47 [1] : vector<8x8xf32> to vector<8xf32>
    %162 = vector.shape_cast %161 : vector<8xf32> to vector<8x1xf32>
    %cst_48 = arith.constant dense<0x7F800000> : vector<8xf32>
    %163 = vector.multi_reduction <minimumf>, %150, %cst_48 [1] : vector<8x128xf32> to vector<8xf32>
    %164 = vector.shape_cast %163 : vector<8xf32> to vector<8x1xf32>
    %165 = arith.cmpf ole, %162, %164 : vector<8x1xf32>
    %166 = vector.broadcast %162 : vector<8x1xf32> to vector<8x8xf32>
    %167 = arith.cmpf oeq, %143, %166 : vector<8x8xf32>
    %cst_49 = arith.constant 1.000000e+30 : f32
    %168 = vector.broadcast %cst_49 : f32 to vector<8x8xf32>
    %169 = arith.select %167, %31, %168 : vector<8x8xi1>, vector<8x8xf32>
    %cst_50 = arith.constant dense<0x7F800000> : vector<8xf32>
    %170 = vector.multi_reduction <minimumf>, %169, %cst_50 [1] : vector<8x8xf32> to vector<8xf32>
    %171 = vector.shape_cast %170 : vector<8xf32> to vector<8x1xf32>
    %172 = vector.broadcast %164 : vector<8x1xf32> to vector<8x128xf32>
    %173 = arith.cmpf oeq, %150, %172 : vector<8x128xf32>
    %cst_51 = arith.constant 1.000000e+30 : f32
    %174 = vector.broadcast %cst_51 : f32 to vector<8x128xf32>
    %175 = arith.select %173, %24, %174 : vector<8x128xi1>, vector<8x128xf32>
    %cst_52 = arith.constant dense<0x7F800000> : vector<8xf32>
    %176 = vector.multi_reduction <minimumf>, %175, %cst_52 [1] : vector<8x128xf32> to vector<8xf32>
    %177 = vector.shape_cast %176 : vector<8xf32> to vector<8x1xf32>
    %178 = arith.minimumf %162, %164 : vector<8x1xf32>
    %179 = arith.select %165, %171, %177 : vector<8x1xi1>, vector<8x1xf32>
    %180 = vector.broadcast %171 : vector<8x1xf32> to vector<8x8xf32>
    %181 = arith.cmpf oeq, %31, %180 : vector<8x8xf32>
    %182 = vector.broadcast %165 : vector<8x1xi1> to vector<8x8xi1>
    %183 = arith.andi %182, %181 : vector<8x8xi1>
    %cst_53 = arith.constant 0x7F800000 : f32
    %184 = vector.broadcast %cst_53 : f32 to vector<8x8xf32>
    %185 = arith.select %183, %184, %143 : vector<8x8xi1>, vector<8x8xf32>
    %cst_54 = arith.constant dense<true> : vector<8x1xi1>
    %186 = arith.xori %165, %cst_54 : vector<8x1xi1>
    %187 = vector.broadcast %177 : vector<8x1xf32> to vector<8x128xf32>
    %188 = arith.cmpf oeq, %24, %187 : vector<8x128xf32>
    %189 = vector.broadcast %186 : vector<8x1xi1> to vector<8x128xi1>
    %190 = arith.andi %189, %188 : vector<8x128xi1>
    %cst_55 = arith.constant 0x7F800000 : f32
    %191 = vector.broadcast %cst_55 : f32 to vector<8x128xf32>
    %192 = arith.select %190, %191, %150 : vector<8x128xi1>, vector<8x128xf32>
    %c3_i32 = arith.constant 3 : i32
    %193 = vector.broadcast %c3_i32 : i32 to vector<8x8xi32>
    %194 = arith.cmpi eq, %32, %193 : vector<8x8xi32>
    %195 = vector.shape_cast %178 : vector<8x1xf32> to vector<8x1xf32>
    %196 = vector.broadcast %195 : vector<8x1xf32> to vector<8x8xf32>
    %197 = arith.select %194, %196, %155 : vector<8x8xi1>, vector<8x8xf32>
    %c3_i32_56 = arith.constant 3 : i32
    %198 = vector.broadcast %c3_i32_56 : i32 to vector<8x8xi32>
    %199 = arith.cmpi eq, %32, %198 : vector<8x8xi32>
    %200 = vector.shape_cast %179 : vector<8x1xf32> to vector<8x1xf32>
    %201 = vector.broadcast %200 : vector<8x1xf32> to vector<8x8xf32>
    %202 = arith.select %199, %201, %160 : vector<8x8xi1>, vector<8x8xf32>
    %cst_57 = arith.constant dense<0x7F800000> : vector<8xf32>
    %203 = vector.multi_reduction <minimumf>, %185, %cst_57 [1] : vector<8x8xf32> to vector<8xf32>
    %204 = vector.shape_cast %203 : vector<8xf32> to vector<8x1xf32>
    %cst_58 = arith.constant dense<0x7F800000> : vector<8xf32>
    %205 = vector.multi_reduction <minimumf>, %192, %cst_58 [1] : vector<8x128xf32> to vector<8xf32>
    %206 = vector.shape_cast %205 : vector<8xf32> to vector<8x1xf32>
    %207 = arith.cmpf ole, %204, %206 : vector<8x1xf32>
    %208 = vector.broadcast %204 : vector<8x1xf32> to vector<8x8xf32>
    %209 = arith.cmpf oeq, %185, %208 : vector<8x8xf32>
    %cst_59 = arith.constant 1.000000e+30 : f32
    %210 = vector.broadcast %cst_59 : f32 to vector<8x8xf32>
    %211 = arith.select %209, %31, %210 : vector<8x8xi1>, vector<8x8xf32>
    %cst_60 = arith.constant dense<0x7F800000> : vector<8xf32>
    %212 = vector.multi_reduction <minimumf>, %211, %cst_60 [1] : vector<8x8xf32> to vector<8xf32>
    %213 = vector.shape_cast %212 : vector<8xf32> to vector<8x1xf32>
    %214 = vector.broadcast %206 : vector<8x1xf32> to vector<8x128xf32>
    %215 = arith.cmpf oeq, %192, %214 : vector<8x128xf32>
    %cst_61 = arith.constant 1.000000e+30 : f32
    %216 = vector.broadcast %cst_61 : f32 to vector<8x128xf32>
    %217 = arith.select %215, %24, %216 : vector<8x128xi1>, vector<8x128xf32>
    %cst_62 = arith.constant dense<0x7F800000> : vector<8xf32>
    %218 = vector.multi_reduction <minimumf>, %217, %cst_62 [1] : vector<8x128xf32> to vector<8xf32>
    %219 = vector.shape_cast %218 : vector<8xf32> to vector<8x1xf32>
    %220 = arith.minimumf %204, %206 : vector<8x1xf32>
    %221 = arith.select %207, %213, %219 : vector<8x1xi1>, vector<8x1xf32>
    %222 = vector.broadcast %213 : vector<8x1xf32> to vector<8x8xf32>
    %223 = arith.cmpf oeq, %31, %222 : vector<8x8xf32>
    %224 = vector.broadcast %207 : vector<8x1xi1> to vector<8x8xi1>
    %225 = arith.andi %224, %223 : vector<8x8xi1>
    %cst_63 = arith.constant 0x7F800000 : f32
    %226 = vector.broadcast %cst_63 : f32 to vector<8x8xf32>
    %227 = arith.select %225, %226, %185 : vector<8x8xi1>, vector<8x8xf32>
    %cst_64 = arith.constant dense<true> : vector<8x1xi1>
    %228 = arith.xori %207, %cst_64 : vector<8x1xi1>
    %229 = vector.broadcast %219 : vector<8x1xf32> to vector<8x128xf32>
    %230 = arith.cmpf oeq, %24, %229 : vector<8x128xf32>
    %231 = vector.broadcast %228 : vector<8x1xi1> to vector<8x128xi1>
    %232 = arith.andi %231, %230 : vector<8x128xi1>
    %cst_65 = arith.constant 0x7F800000 : f32
    %233 = vector.broadcast %cst_65 : f32 to vector<8x128xf32>
    %234 = arith.select %232, %233, %192 : vector<8x128xi1>, vector<8x128xf32>
    %c4_i32 = arith.constant 4 : i32
    %235 = vector.broadcast %c4_i32 : i32 to vector<8x8xi32>
    %236 = arith.cmpi eq, %32, %235 : vector<8x8xi32>
    %237 = vector.shape_cast %220 : vector<8x1xf32> to vector<8x1xf32>
    %238 = vector.broadcast %237 : vector<8x1xf32> to vector<8x8xf32>
    %239 = arith.select %236, %238, %197 : vector<8x8xi1>, vector<8x8xf32>
    %c4_i32_66 = arith.constant 4 : i32
    %240 = vector.broadcast %c4_i32_66 : i32 to vector<8x8xi32>
    %241 = arith.cmpi eq, %32, %240 : vector<8x8xi32>
    %242 = vector.shape_cast %221 : vector<8x1xf32> to vector<8x1xf32>
    %243 = vector.broadcast %242 : vector<8x1xf32> to vector<8x8xf32>
    %244 = arith.select %241, %243, %202 : vector<8x8xi1>, vector<8x8xf32>
    %cst_67 = arith.constant dense<0x7F800000> : vector<8xf32>
    %245 = vector.multi_reduction <minimumf>, %227, %cst_67 [1] : vector<8x8xf32> to vector<8xf32>
    %246 = vector.shape_cast %245 : vector<8xf32> to vector<8x1xf32>
    %cst_68 = arith.constant dense<0x7F800000> : vector<8xf32>
    %247 = vector.multi_reduction <minimumf>, %234, %cst_68 [1] : vector<8x128xf32> to vector<8xf32>
    %248 = vector.shape_cast %247 : vector<8xf32> to vector<8x1xf32>
    %249 = arith.cmpf ole, %246, %248 : vector<8x1xf32>
    %250 = vector.broadcast %246 : vector<8x1xf32> to vector<8x8xf32>
    %251 = arith.cmpf oeq, %227, %250 : vector<8x8xf32>
    %cst_69 = arith.constant 1.000000e+30 : f32
    %252 = vector.broadcast %cst_69 : f32 to vector<8x8xf32>
    %253 = arith.select %251, %31, %252 : vector<8x8xi1>, vector<8x8xf32>
    %cst_70 = arith.constant dense<0x7F800000> : vector<8xf32>
    %254 = vector.multi_reduction <minimumf>, %253, %cst_70 [1] : vector<8x8xf32> to vector<8xf32>
    %255 = vector.shape_cast %254 : vector<8xf32> to vector<8x1xf32>
    %256 = vector.broadcast %248 : vector<8x1xf32> to vector<8x128xf32>
    %257 = arith.cmpf oeq, %234, %256 : vector<8x128xf32>
    %cst_71 = arith.constant 1.000000e+30 : f32
    %258 = vector.broadcast %cst_71 : f32 to vector<8x128xf32>
    %259 = arith.select %257, %24, %258 : vector<8x128xi1>, vector<8x128xf32>
    %cst_72 = arith.constant dense<0x7F800000> : vector<8xf32>
    %260 = vector.multi_reduction <minimumf>, %259, %cst_72 [1] : vector<8x128xf32> to vector<8xf32>
    %261 = vector.shape_cast %260 : vector<8xf32> to vector<8x1xf32>
    %262 = arith.minimumf %246, %248 : vector<8x1xf32>
    %263 = arith.select %249, %255, %261 : vector<8x1xi1>, vector<8x1xf32>
    %264 = vector.broadcast %255 : vector<8x1xf32> to vector<8x8xf32>
    %265 = arith.cmpf oeq, %31, %264 : vector<8x8xf32>
    %266 = vector.broadcast %249 : vector<8x1xi1> to vector<8x8xi1>
    %267 = arith.andi %266, %265 : vector<8x8xi1>
    %cst_73 = arith.constant 0x7F800000 : f32
    %268 = vector.broadcast %cst_73 : f32 to vector<8x8xf32>
    %269 = arith.select %267, %268, %227 : vector<8x8xi1>, vector<8x8xf32>
    %cst_74 = arith.constant dense<true> : vector<8x1xi1>
    %270 = arith.xori %249, %cst_74 : vector<8x1xi1>
    %271 = vector.broadcast %261 : vector<8x1xf32> to vector<8x128xf32>
    %272 = arith.cmpf oeq, %24, %271 : vector<8x128xf32>
    %273 = vector.broadcast %270 : vector<8x1xi1> to vector<8x128xi1>
    %274 = arith.andi %273, %272 : vector<8x128xi1>
    %cst_75 = arith.constant 0x7F800000 : f32
    %275 = vector.broadcast %cst_75 : f32 to vector<8x128xf32>
    %276 = arith.select %274, %275, %234 : vector<8x128xi1>, vector<8x128xf32>
    %c5_i32 = arith.constant 5 : i32
    %277 = vector.broadcast %c5_i32 : i32 to vector<8x8xi32>
    %278 = arith.cmpi eq, %32, %277 : vector<8x8xi32>
    %279 = vector.shape_cast %262 : vector<8x1xf32> to vector<8x1xf32>
    %280 = vector.broadcast %279 : vector<8x1xf32> to vector<8x8xf32>
    %281 = arith.select %278, %280, %239 : vector<8x8xi1>, vector<8x8xf32>
    %c5_i32_76 = arith.constant 5 : i32
    %282 = vector.broadcast %c5_i32_76 : i32 to vector<8x8xi32>
    %283 = arith.cmpi eq, %32, %282 : vector<8x8xi32>
    %284 = vector.shape_cast %263 : vector<8x1xf32> to vector<8x1xf32>
    %285 = vector.broadcast %284 : vector<8x1xf32> to vector<8x8xf32>
    %286 = arith.select %283, %285, %244 : vector<8x8xi1>, vector<8x8xf32>
    %cst_77 = arith.constant dense<0x7F800000> : vector<8xf32>
    %287 = vector.multi_reduction <minimumf>, %269, %cst_77 [1] : vector<8x8xf32> to vector<8xf32>
    %288 = vector.shape_cast %287 : vector<8xf32> to vector<8x1xf32>
    %cst_78 = arith.constant dense<0x7F800000> : vector<8xf32>
    %289 = vector.multi_reduction <minimumf>, %276, %cst_78 [1] : vector<8x128xf32> to vector<8xf32>
    %290 = vector.shape_cast %289 : vector<8xf32> to vector<8x1xf32>
    %291 = arith.cmpf ole, %288, %290 : vector<8x1xf32>
    %292 = vector.broadcast %288 : vector<8x1xf32> to vector<8x8xf32>
    %293 = arith.cmpf oeq, %269, %292 : vector<8x8xf32>
    %cst_79 = arith.constant 1.000000e+30 : f32
    %294 = vector.broadcast %cst_79 : f32 to vector<8x8xf32>
    %295 = arith.select %293, %31, %294 : vector<8x8xi1>, vector<8x8xf32>
    %cst_80 = arith.constant dense<0x7F800000> : vector<8xf32>
    %296 = vector.multi_reduction <minimumf>, %295, %cst_80 [1] : vector<8x8xf32> to vector<8xf32>
    %297 = vector.shape_cast %296 : vector<8xf32> to vector<8x1xf32>
    %298 = vector.broadcast %290 : vector<8x1xf32> to vector<8x128xf32>
    %299 = arith.cmpf oeq, %276, %298 : vector<8x128xf32>
    %cst_81 = arith.constant 1.000000e+30 : f32
    %300 = vector.broadcast %cst_81 : f32 to vector<8x128xf32>
    %301 = arith.select %299, %24, %300 : vector<8x128xi1>, vector<8x128xf32>
    %cst_82 = arith.constant dense<0x7F800000> : vector<8xf32>
    %302 = vector.multi_reduction <minimumf>, %301, %cst_82 [1] : vector<8x128xf32> to vector<8xf32>
    %303 = vector.shape_cast %302 : vector<8xf32> to vector<8x1xf32>
    %304 = arith.minimumf %288, %290 : vector<8x1xf32>
    %305 = arith.select %291, %297, %303 : vector<8x1xi1>, vector<8x1xf32>
    %306 = vector.broadcast %297 : vector<8x1xf32> to vector<8x8xf32>
    %307 = arith.cmpf oeq, %31, %306 : vector<8x8xf32>
    %308 = vector.broadcast %291 : vector<8x1xi1> to vector<8x8xi1>
    %309 = arith.andi %308, %307 : vector<8x8xi1>
    %cst_83 = arith.constant 0x7F800000 : f32
    %310 = vector.broadcast %cst_83 : f32 to vector<8x8xf32>
    %311 = arith.select %309, %310, %269 : vector<8x8xi1>, vector<8x8xf32>
    %cst_84 = arith.constant dense<true> : vector<8x1xi1>
    %312 = arith.xori %291, %cst_84 : vector<8x1xi1>
    %313 = vector.broadcast %303 : vector<8x1xf32> to vector<8x128xf32>
    %314 = arith.cmpf oeq, %24, %313 : vector<8x128xf32>
    %315 = vector.broadcast %312 : vector<8x1xi1> to vector<8x128xi1>
    %316 = arith.andi %315, %314 : vector<8x128xi1>
    %cst_85 = arith.constant 0x7F800000 : f32
    %317 = vector.broadcast %cst_85 : f32 to vector<8x128xf32>
    %318 = arith.select %316, %317, %276 : vector<8x128xi1>, vector<8x128xf32>
    %c6_i32 = arith.constant 6 : i32
    %319 = vector.broadcast %c6_i32 : i32 to vector<8x8xi32>
    %320 = arith.cmpi eq, %32, %319 : vector<8x8xi32>
    %321 = vector.shape_cast %304 : vector<8x1xf32> to vector<8x1xf32>
    %322 = vector.broadcast %321 : vector<8x1xf32> to vector<8x8xf32>
    %323 = arith.select %320, %322, %281 : vector<8x8xi1>, vector<8x8xf32>
    %c6_i32_86 = arith.constant 6 : i32
    %324 = vector.broadcast %c6_i32_86 : i32 to vector<8x8xi32>
    %325 = arith.cmpi eq, %32, %324 : vector<8x8xi32>
    %326 = vector.shape_cast %305 : vector<8x1xf32> to vector<8x1xf32>
    %327 = vector.broadcast %326 : vector<8x1xf32> to vector<8x8xf32>
    %328 = arith.select %325, %327, %286 : vector<8x8xi1>, vector<8x8xf32>
    %cst_87 = arith.constant dense<0x7F800000> : vector<8xf32>
    %329 = vector.multi_reduction <minimumf>, %311, %cst_87 [1] : vector<8x8xf32> to vector<8xf32>
    %330 = vector.shape_cast %329 : vector<8xf32> to vector<8x1xf32>
    %cst_88 = arith.constant dense<0x7F800000> : vector<8xf32>
    %331 = vector.multi_reduction <minimumf>, %318, %cst_88 [1] : vector<8x128xf32> to vector<8xf32>
    %332 = vector.shape_cast %331 : vector<8xf32> to vector<8x1xf32>
    %333 = arith.cmpf ole, %330, %332 : vector<8x1xf32>
    %334 = vector.broadcast %330 : vector<8x1xf32> to vector<8x8xf32>
    %335 = arith.cmpf oeq, %311, %334 : vector<8x8xf32>
    %cst_89 = arith.constant 1.000000e+30 : f32
    %336 = vector.broadcast %cst_89 : f32 to vector<8x8xf32>
    %337 = arith.select %335, %31, %336 : vector<8x8xi1>, vector<8x8xf32>
    %cst_90 = arith.constant dense<0x7F800000> : vector<8xf32>
    %338 = vector.multi_reduction <minimumf>, %337, %cst_90 [1] : vector<8x8xf32> to vector<8xf32>
    %339 = vector.shape_cast %338 : vector<8xf32> to vector<8x1xf32>
    %340 = vector.broadcast %332 : vector<8x1xf32> to vector<8x128xf32>
    %341 = arith.cmpf oeq, %318, %340 : vector<8x128xf32>
    %cst_91 = arith.constant 1.000000e+30 : f32
    %342 = vector.broadcast %cst_91 : f32 to vector<8x128xf32>
    %343 = arith.select %341, %24, %342 : vector<8x128xi1>, vector<8x128xf32>
    %cst_92 = arith.constant dense<0x7F800000> : vector<8xf32>
    %344 = vector.multi_reduction <minimumf>, %343, %cst_92 [1] : vector<8x128xf32> to vector<8xf32>
    %345 = vector.shape_cast %344 : vector<8xf32> to vector<8x1xf32>
    %346 = arith.minimumf %330, %332 : vector<8x1xf32>
    %347 = arith.select %333, %339, %345 : vector<8x1xi1>, vector<8x1xf32>
    %c7_i32 = arith.constant 7 : i32
    %348 = vector.broadcast %c7_i32 : i32 to vector<8x8xi32>
    %349 = arith.cmpi eq, %32, %348 : vector<8x8xi32>
    %350 = vector.shape_cast %346 : vector<8x1xf32> to vector<8x1xf32>
    %351 = vector.broadcast %350 : vector<8x1xf32> to vector<8x8xf32>
    %352 = arith.select %349, %351, %323 : vector<8x8xi1>, vector<8x8xf32>
    %c7_i32_93 = arith.constant 7 : i32
    %353 = vector.broadcast %c7_i32_93 : i32 to vector<8x8xi32>
    %354 = arith.cmpi eq, %32, %353 : vector<8x8xi32>
    %355 = vector.shape_cast %347 : vector<8x1xf32> to vector<8x1xf32>
    %356 = vector.broadcast %355 : vector<8x1xf32> to vector<8x8xf32>
    %357 = arith.select %354, %356, %328 : vector<8x8xi1>, vector<8x8xf32>
    %c0_94 = arith.constant 0 : index
    %c0_95 = arith.constant 0 : index
    %358 = vector.load %arg6[%c0_94, %c0_95] : memref<8x8xf32, #tpu.memory_space<vmem>>, vector<8x8xf32>
    tpu.vector_store %arg6[%c0_94, %c0_95], %352 {strides = array<i32>} : memref<8x8xf32, #tpu.memory_space<vmem>>, vector<8x8xf32>,
    %359 = arith.fptosi %357 : vector<8x8xf32> to vector<8x8xi32>
    %c0_96 = arith.constant 0 : index
    %c0_97 = arith.constant 0 : index
    %360 = vector.load %arg7[%c0_96, %c0_97] : memref<8x8xi32, #tpu.memory_space<vmem>>, vector<8x8xi32>
    tpu.vector_store %arg7[%c0_96, %c0_97], %359 {strides = array<i32>} : memref<8x8xi32, #tpu.memory_space<vmem>>, vector<8x8xi32>,
    %c0_i32_98 = arith.constant 0 : i32
    %361 = arith.cmpi eq, %arg2, %c0_i32_98 : i32
    %362 = arith.extui %361 : i1 to i32
    %c0_i32_99 = arith.constant 0 : i32
    %363 = arith.cmpi ne, %362, %c0_i32_99 : i32
    scf.if %363 {
      %c0_100 = arith.constant 0 : index
      %c0_101 = arith.constant 0 : index
      %364 = vector.load %arg7[%c0_100, %c0_101] : memref<8x8xi32, #tpu.memory_space<vmem>>, vector<8x8xi32>
      %c0_102 = arith.constant 0 : index
      %c0_103 = arith.constant 0 : index
      %c0_104 = arith.constant 0 : index
      %365 = vector.load %arg5[%c0_102, %c0_103, %c0_104] : memref<1x8x8xi32, #tpu.memory_space<vmem>>, vector<1x8x8xi32>
      %366 = vector.shape_cast %365 : vector<1x8x8xi32> to vector<8x8xi32>
      %367 = vector.shape_cast %364 : vector<8x8xi32> to vector<1x8x8xi32>
      tpu.vector_store %arg5[%c0_102, %c0_103, %c0_104], %367 {strides = array<i32>} : memref<1x8x8xi32, #tpu.memory_space<vmem>>, vector<1x8x8xi32>,
    } else {
    }
    return
  }
  func.func @transform_0(%arg0: i32, %arg1: i32, %arg2: i32) -> (i32, i32, i32) {
    %c0_i32 = arith.constant 0 : i32
    %c0_i32_0 = arith.constant 0 : i32
    return %arg0, %arg1, %c0_i32 : i32, i32, i32
  }
  func.func @transform_1(%arg0: i32, %arg1: i32, %arg2: i32) -> (i32, i32, i32) {
    %c0_i32 = arith.constant 0 : i32
    %c0_i32_0 = arith.constant 0 : i32
    return %arg0, %c0_i32, %arg2 : i32, i32, i32
  }
  func.func @transform_2(%arg0: i32, %arg1: i32, %arg2: i32) -> (i32, i32, i32) {
    %c0_i32 = arith.constant 0 : i32
    %c0_i32_0 = arith.constant 0 : i32
    return %arg0, %arg1, %c0_i32 : i32, i32, i32
  }
}

module attributes {stable_mosaic.version = 11 : i64} {
  func.func @_pool_kernel(%arg0: i32, %arg1: memref<8x16x128xf32, #tpu.memory_space<vmem>>, %arg2: memref<16x128xf32, #tpu.memory_space<vmem>>) attributes {dimension_semantics = [#tpu.dimension_semantics<parallel>], iteration_bounds = array<i64: 1>, scalar_prefetch = 0 : i64, scratch_operands = 0 : i64, tpu.core_type = #tpu.core_type<tc>, window_params = [{transform_indices = @transform_0, window_bounds = array<i64: 8, 16, 128>}, {transform_indices = @transform_1, window_bounds = array<i64: 16, 128>}]} {
    %c0 = arith.constant 0 : index
    %c0_0 = arith.constant 0 : index
    %c0_1 = arith.constant 0 : index
    %0 = vector.load %arg1[%c0, %c0_0, %c0_1] : memref<8x16x128xf32, #tpu.memory_space<vmem>>, vector<1x16x128xf32>
    %1 = vector.shape_cast %0 : vector<1x16x128xf32> to vector<16x128xf32>
    %c1 = arith.constant 1 : index
    %c0_2 = arith.constant 0 : index
    %c0_3 = arith.constant 0 : index
    %2 = vector.load %arg1[%c1, %c0_2, %c0_3] : memref<8x16x128xf32, #tpu.memory_space<vmem>>, vector<1x16x128xf32>
    %3 = vector.shape_cast %2 : vector<1x16x128xf32> to vector<16x128xf32>
    %4 = arith.maximumf %1, %3 : vector<16x128xf32>
    %c2 = arith.constant 2 : index
    %c0_4 = arith.constant 0 : index
    %c0_5 = arith.constant 0 : index
    %5 = vector.load %arg1[%c2, %c0_4, %c0_5] : memref<8x16x128xf32, #tpu.memory_space<vmem>>, vector<1x16x128xf32>
    %6 = vector.shape_cast %5 : vector<1x16x128xf32> to vector<16x128xf32>
    %7 = arith.maximumf %4, %6 : vector<16x128xf32>
    %c3 = arith.constant 3 : index
    %c0_6 = arith.constant 0 : index
    %c0_7 = arith.constant 0 : index
    %8 = vector.load %arg1[%c3, %c0_6, %c0_7] : memref<8x16x128xf32, #tpu.memory_space<vmem>>, vector<1x16x128xf32>
    %9 = vector.shape_cast %8 : vector<1x16x128xf32> to vector<16x128xf32>
    %10 = arith.maximumf %7, %9 : vector<16x128xf32>
    %c4 = arith.constant 4 : index
    %c0_8 = arith.constant 0 : index
    %c0_9 = arith.constant 0 : index
    %11 = vector.load %arg1[%c4, %c0_8, %c0_9] : memref<8x16x128xf32, #tpu.memory_space<vmem>>, vector<1x16x128xf32>
    %12 = vector.shape_cast %11 : vector<1x16x128xf32> to vector<16x128xf32>
    %13 = arith.maximumf %10, %12 : vector<16x128xf32>
    %c5 = arith.constant 5 : index
    %c0_10 = arith.constant 0 : index
    %c0_11 = arith.constant 0 : index
    %14 = vector.load %arg1[%c5, %c0_10, %c0_11] : memref<8x16x128xf32, #tpu.memory_space<vmem>>, vector<1x16x128xf32>
    %15 = vector.shape_cast %14 : vector<1x16x128xf32> to vector<16x128xf32>
    %16 = arith.maximumf %13, %15 : vector<16x128xf32>
    %c6 = arith.constant 6 : index
    %c0_12 = arith.constant 0 : index
    %c0_13 = arith.constant 0 : index
    %17 = vector.load %arg1[%c6, %c0_12, %c0_13] : memref<8x16x128xf32, #tpu.memory_space<vmem>>, vector<1x16x128xf32>
    %18 = vector.shape_cast %17 : vector<1x16x128xf32> to vector<16x128xf32>
    %19 = arith.maximumf %16, %18 : vector<16x128xf32>
    %c7 = arith.constant 7 : index
    %c0_14 = arith.constant 0 : index
    %c0_15 = arith.constant 0 : index
    %20 = vector.load %arg1[%c7, %c0_14, %c0_15] : memref<8x16x128xf32, #tpu.memory_space<vmem>>, vector<1x16x128xf32>
    %21 = vector.shape_cast %20 : vector<1x16x128xf32> to vector<16x128xf32>
    %22 = arith.maximumf %19, %21 : vector<16x128xf32>
    %c0_16 = arith.constant 0 : index
    %c0_17 = arith.constant 0 : index
    %23 = vector.load %arg2[%c0_16, %c0_17] : memref<16x128xf32, #tpu.memory_space<vmem>>, vector<16x128xf32>
    tpu.vector_store %arg2[%c0_16, %c0_17], %22 {strides = array<i32>} : memref<16x128xf32, #tpu.memory_space<vmem>>, vector<16x128xf32>,
    return
  }
  func.func @transform_0(%arg0: i32) -> (i32, i32, i32) {
    %c0_i32 = arith.constant 0 : i32
    %c0_i32_0 = arith.constant 0 : i32
    %c0_i32_1 = arith.constant 0 : i32
    return %c0_i32, %arg0, %c0_i32_0 : i32, i32, i32
  }
  func.func @transform_1(%arg0: i32) -> (i32, i32) {
    %c0_i32 = arith.constant 0 : i32
    %c0_i32_0 = arith.constant 0 : i32
    return %arg0, %c0_i32 : i32, i32
  }
}

</mosaic_0001>

<llo_original>
// kernel: custom-call.4
$region0: #{custom-call.4}
  %s0 = inlined_call_operand.vmem [shape: f32[2,16], index: 0, kind: output, shape index: {}]

// kernel: down_transition.4
$region0: #{down_transition.4}
  #allocation0 [shape = 'u32[]', space=smem, size = 0x4, offset = 0x4, fixed_abs, tag = 'smem constant byte address 0x4 - core index']
  #allocation1 [shape = 'u32[144,128]{1,0:T(1,128)}', space=vmem, size = 0x12000, scoped, tag = 'internal scratch']
  %s0 = inlined_call_operand.vmem [shape: f32[32,8], index: 0, kind: input, shape index: {}]
  %s1 = inlined_call_operand.vmem [shape: f32[8,128], index: 1, kind: input, shape index: {}]
  %s2 = inlined_call_operand.vmem [shape: f32[1,128], index: 2, kind: input, shape index: {}]
  %s3 = inlined_call_operand.vmem [shape: f32[32,128], index: 3, kind: output, shape index: {}]
  %s4 = sld [smem:[#allocation0]]
  $region22: #{down_transition.4} parent=0
    _
  %s6 = ssub.s32 1, %s4
  %s7 = scalar_select 0, %s6, %s4
  // Predicated region
  $region2: #{down_transition.4} parent=0 // pred_check
    _
  $region3: #{down_transition.4} parent=0 // pred_check_branch
    %9 = sbr.rel (0) target = $region5
  $region4: #{down_transition.4} parent=0 // pred_region
    _
  $region5: #{down_transition.4} parent=0 // pred_fallthru
    _
  // Predicated region
  $region6: #{down_transition.4} parent=0 // pred_check
    _
  $region7: #{down_transition.4} parent=0 // pred_check_branch
    %11 = sbr.rel (0) target = $region9
  $region8: #{down_transition.4} parent=0 // pred_region
    _
  $region9: #{down_transition.4} parent=0 // pred_fallthru
    _
  // Predicated region
  $region10: #{down_transition.4} parent=0 // pred_check
    _
  $region11: #{down_transition.4} parent=0 // pred_check_branch
    %13 = sbr.rel (0) target = $region13
  $region12: #{down_transition.4} parent=0 // pred_region
    _
  $region13: #{down_transition.4} parent=0 // pred_fallthru
    _
  %v14 = vld [vmem:[%s0] sm:$0xff]
  %v15 = vld [vmem:[%s0 + $0x8] sm:$0xff]
  %v16 = vld [vmem:[%s0 + $0x10] sm:$0xff]
  %v17 = vld [vmem:[%s0 + $0x18] sm:$0xff]
  %v18 = vld [vmem:[%s1] sm:$0xff]
  %v19 = vld [vmem:[%s2] sm:$0x1]
  %v21 = vlaneseq
  %v22 = vshrl.u32 %v21, 7
  %v23 = vsub.s32 0, %v22
  %v24 = vrot.slane %v19, %v23
  %vm26 = vcmask 64512
  %v28 = vsel %vm26, %v14, 0
  %v31 = vsel %vm26, %v15, 0
  %v34 = vsel %vm26, %v16, 0
  %v37 = vsel %vm26, %v17, 0
  %39 = vmatprep.subr.mxu0 0.0
  %40 = vmatpush1.msra.mxu0 0.0
  %41 = vmatprep.subr.mxu0 0.0
  %42 = vmatpush1.msra.mxu0 0.0
  %43 = vmatprep.subr.mxu0 0.0
  %44 = vmatpush1.msra.mxu0 0.0
  %45 = vmatprep.subr.mxu0 0.0
  %46 = vmatpush1.msra.mxu0 0.0
  %47 = vmatprep.subr.mxu0 0.0
  %48 = vmatpush1.msra.mxu0 0.0
  %49 = vmatprep.subr.mxu0 0.0
  %50 = vmatpush1.msra.mxu0 0.0
  %51 = vmatprep.subr.mxu0 0.0
  %52 = vmatpush1.msra.mxu0 0.0
  %53 = vmatprep.subr.mxu0 0.0
  %54 = vmatpush1.msra.mxu0 0.0
  %55 = vmatprep.subr.mxu0 0.0
  %56 = vmatpush1.msra.mxu0 0.0
  %57 = vmatprep.subr.mxu0 0.0
  %58 = vmatpush1.msra.mxu0 0.0
  %59 = vmatprep.subr.mxu0 0.0
  %60 = vmatpush1.msra.mxu0 0.0
  %61 = vmatprep.subr.mxu0 0.0
  %62 = vmatpush1.msra.mxu0 0.0
  %63 = vmatprep.subr.mxu0 0.0
  %64 = vmatpush1.msra.mxu0 0.0
  %65 = vmatprep.subr.mxu0 0.0
  %66 = vmatpush1.msra.mxu0 0.0
  %67 = vmatprep.subr.mxu0 0.0
  %68 = vmatpush1.msra.mxu0 0.0
  %69 = vmatprep.subr.mxu0 0.0
  %70 = vmatpush1.msra.mxu0 %v18
  %71 = vmatprep.subr.mxu0 0.0
  %72 = vmatpush2.msra.mxu0 0.0
  %73 = vmatprep.subr.mxu0 0.0
  %74 = vmatpush2.msra.mxu0 0.0
  %75 = vmatprep.subr.mxu0 0.0
  %76 = vmatpush2.msra.mxu0 0.0
  %77 = vmatprep.subr.mxu0 0.0
  %78 = vmatpush2.msra.mxu0 0.0
  %79 = vmatprep.subr.mxu0 0.0
  %80 = vmatpush2.msra.mxu0 0.0
  %81 = vmatprep.subr.mxu0 0.0
  %82 = vmatpush2.msra.mxu0 0.0
  %83 = vmatprep.subr.mxu0 0.0
  %84 = vmatpush2.msra.mxu0 0.0
  %85 = vmatprep.subr.mxu0 0.0
  %86 = vmatpush2.msra.mxu0 0.0
  %87 = vmatprep.subr.mxu0 0.0
  %88 = vmatpush2.msra.mxu0 0.0
  %89 = vmatprep.subr.mxu0 0.0
  %90 = vmatpush2.msra.mxu0 0.0
  %91 = vmatprep.subr.mxu0 0.0
  %92 = vmatpush2.msra.mxu0 0.0
  %93 = vmatprep.subr.mxu0 0.0
  %94 = vmatpush2.msra.mxu0 0.0
  %95 = vmatprep.subr.mxu0 0.0
  %96 = vmatpush2.msra.mxu0 0.0
  %97 = vmatprep.subr.mxu0 0.0
  %98 = vmatpush2.msra.mxu0 0.0
  %99 = vmatprep.subr.mxu0 0.0
  %100 = vmatpush2.msra.mxu0 0.0
  %101 = vmatprep.subr.mxu0 0.0
  %102 = vmatpush2.msra.mxu0 0.0
  %103 = vmatprep.mubr.f32.mxu0 0.0
  %104 = vmatmul.mubr.f32.gmra.mxu0 %v28
  %v105 = vpop.f32.mrf.mxu0
  %v106 = vadd.f32 %v24, %v105
  %v107 = vpop.f32.mrf.mxu0
  %108 = vmatprep.mubr.f32.mxu0 0.0
  %109 = vmatmul.mubr.f32.gmra.mxu0 %v31
  %v110 = vpop.f32.mrf.mxu0
  %v111 = vadd.f32 %v24, %v110
  %v112 = vpop.f32.mrf.mxu0
  %113 = vmatprep.mubr.f32.mxu0 0.0
  %114 = vmatmul.mubr.f32.gmra.mxu0 %v34
  %v115 = vpop.f32.mrf.mxu0
  %v116 = vadd.f32 %v24, %v115
  %v117 = vpop.f32.mrf.mxu0
  %118 = vmatprep.mubr.f32.mxu0 0.0
  %119 = vmatmul.mubr.f32.gmra.mxu0 %v37
  %v120 = vpop.f32.mrf.mxu0
  %v121 = vadd.f32 %v24, %v120
  %v122 = vpop.f32.mrf.mxu0
  %123 = vdwg.mxu0
  %v124 = vmax.f32 %v106, 0.0
  %v125 = vmax.f32 %v111, 0.0
  %v126 = vmax.f32 %v116, 0.0
  %v127 = vmax.f32 %v121, 0.0
  %128 = vst [vmem:[%s3] sm:$0xff] %v124
  %129 = vst [vmem:[%s3 + $0x8] sm:$0xff] %v125
  %130 = vst [vmem:[%s3 + $0x10] sm:$0xff] %v126
  %131 = vst [vmem:[%s3 + $0x18] sm:$0xff] %v127
  // Predicated region
  $region14: #{down_transition.4} parent=0 // pred_check
    _
  $region15: #{down_transition.4} parent=0 // pred_check_branch
    %133 = sbr.rel (0) target = $region17
  $region16: #{down_transition.4} parent=0 // pred_region
    _
  $region17: #{down_transition.4} parent=0 // pred_fallthru
    _
  // Predicated region
  $region18: #{down_transition.4} parent=0 // pred_check
    _
  $region19: #{down_transition.4} parent=0 // pred_check_branch
    %135 = sbr.rel (0) target = $region21
  $region20: #{down_transition.4} parent=0 // pred_region
    _
  $region21: #{down_transition.4} parent=0 // pred_fallthru
    _

// kernel: down_transition.5
$region0: #{down_transition.5}
  #allocation0 [shape = 'u32[]', space=smem, size = 0x4, offset = 0x4, fixed_abs, tag = 'smem constant byte address 0x4 - core index']
  #allocation1 [shape = 'u32[144,128]{1,0:T(1,128)}', space=vmem, size = 0x12000, scoped, tag = 'internal scratch']
  %s0 = inlined_call_operand.vmem [shape: f32[8,16,128], index: 0, kind: input, shape index: {}]
  %s1 = inlined_call_operand.vmem [shape: f32[16,128], index: 1, kind: output, shape index: {}]
  %s2 = sld [smem:[#allocation0]]
  $region14: #{down_transition.5} parent=0
    _
  %s4 = ssub.s32 1, %s2
  %s5 = scalar_select 0, %s4, %s2
  // Predicated region
  $region2: #{down_transition.5} parent=0 // pred_check
    _
  $region3: #{down_transition.5} parent=0 // pred_check_branch
    %7 = sbr.rel (0) target = $region5
  $region4: #{down_transition.5} parent=0 // pred_region
    _
  $region5: #{down_transition.5} parent=0 // pred_fallthru
    _
  %v8 = vld [vmem:[%s0] sm:$0xff]
  %v9 = vld [vmem:[%s0 + $0x8] sm:$0xff]
  %s10 = scalar_lea.vmem %s0, 16
  %v11 = vld [vmem:[%s10] sm:$0xff]
  %v12 = vld [vmem:[%s10 + $0x8] sm:$0xff]
  %v13 = vmax.f32 %v8, %v11
  %v14 = vmax.f32 %v9, %v12
  %s15 = scalar_lea.vmem %s0, 32
  %v16 = vld [vmem:[%s15] sm:$0xff]
  %v17 = vld [vmem:[%s15 + $0x8] sm:$0xff]
  %v18 = vmax.f32 %v13, %v16
  %v19 = vmax.f32 %v14, %v17
  %s20 = scalar_lea.vmem %s0, 48
  %v21 = vld [vmem:[%s20] sm:$0xff]
  %v22 = vld [vmem:[%s20 + $0x8] sm:$0xff]
  %v23 = vmax.f32 %v18, %v21
  %v24 = vmax.f32 %v19, %v22
  %s25 = scalar_lea.vmem %s0, 64
  %v26 = vld [vmem:[%s25] sm:$0xff]
  %v27 = vld [vmem:[%s25 + $0x8] sm:$0xff]
  %v28 = vmax.f32 %v23, %v26
  %v29 = vmax.f32 %v24, %v27
  %s30 = scalar_lea.vmem %s0, 80
  %v31 = vld [vmem:[%s30] sm:$0xff]
  %v32 = vld [vmem:[%s30 + $0x8] sm:$0xff]
  %v33 = vmax.f32 %v28, %v31
  %v34 = vmax.f32 %v29, %v32
  %s35 = scalar_lea.vmem %s0, 96
  %v36 = vld [vmem:[%s35] sm:$0xff]
  %v37 = vld [vmem:[%s35 + $0x8] sm:$0xff]
  %v38 = vmax.f32 %v33, %v36
  %v39 = vmax.f32 %v34, %v37
  %s40 = scalar_lea.vmem %s0, 112
  %v41 = vld [vmem:[%s40] sm:$0xff]
  %v42 = vld [vmem:[%s40 + $0x8] sm:$0xff]
  %v43 = vmax.f32 %v38, %v41
  %v44 = vmax.f32 %v39, %v42
  %45 = vst [vmem:[%s1] sm:$0xff] %v43
  %46 = vst [vmem:[%s1 + $0x8] sm:$0xff] %v44
  // Predicated region
  $region6: #{down_transition.5} parent=0 // pred_check
    _
  $region7: #{down_transition.5} parent=0 // pred_check_branch
    %48 = sbr.rel (0) target = $region9
  $region8: #{down_transition.5} parent=0 // pred_region
    _
  $region9: #{down_transition.5} parent=0 // pred_fallthru
    _
  // Predicated region
  $region10: #{down_transition.5} parent=0 // pred_check
    _
  $region11: #{down_transition.5} parent=0 // pred_check_branch
    %50 = sbr.rel (0) target = $region13
  $region12: #{down_transition.5} parent=0 // pred_region
    _
  $region13: #{down_transition.5} parent=0 // pred_fallthru
    _

// kernel: down_transition.3
$region0: #{down_transition.3}
  #allocation0 [shape = 'u32[]', space=smem, size = 0x4, offset = 0x4, fixed_abs, tag = 'smem constant byte address 0x4 - core index']
  #allocation1 [shape = 'u32[144,128]{1,0:T(1,128)}', space=vmem, size = 0x12000, scoped, tag = 'internal scratch']
  #allocation2 [shape = 'f32[8,8]{1,0:T(8,128)}', space=vmem, size = 0x1000, scoped, tag = 'scratch operand']
  #allocation3 [shape = 's32[8,8]{1,0:T(8,128)}', space=vmem, size = 0x1000, scoped, tag = 'scratch operand']
  %s0 = inlined_call_operand.vmem [shape: f32[2,8,8], index: 0, kind: input, shape index: {}]
  %s1 = inlined_call_operand.vmem [shape: f32[2,8,128], index: 1, kind: input, shape index: {}]
  %s2 = inlined_call_operand.vmem [shape: s32[2,8,8], index: 2, kind: output, shape index: {}]
  %s3 = sld [smem:[#allocation0]]
  $region49: #{down_transition.3} parent=0
    _
  %s5 = ssub.s32 1, %s3
  %s6 = scalar_select 0, %s5, %s3
  loop: start=0, step=1, limit=4
  $region2: #{down_transition.3} parent=0 // loop_pre_header
    _
  $region3: #{down_transition.3} parent=0 // loop_header
    %s8 = sphi 0, %s12
    %p9 = scmp.ge.s32.totalorder %s8, 4
    %s15 = sphi 0, %s34
    %s16 = sphi 0, %s30
    %s17 = sphi 0, %s26
    %s18 = sphi 0, %s15
    %s19 = sphi 0, %s16
    %s20 = sphi 0, %s17
    %s21 = sphi 0, %s18
    %s22 = sphi 0, %s19
    %s23 = sphi 0, %s20
    %s39 = sphi 0, %s41
    %s42 = sphi 0, %s39
    %s43 = sphi 0, %s42
    %s59 = sphi 0, %s43
    %s67 = sphi 0, %s69
    %s70 = sphi 0, %s67
    %s71 = sphi 0, %s70
    %s87 = sphi 0, %s71
    %s95 = sphi 0, %s97
    %s98 = sphi 0, %s95
    %s99 = sphi 0, %s98
    %s115 = sphi 0, %s99
  $region4: #{down_transition.3} parent=0 // loop_header_branch
    %11 = sbr.rel (%p9) target = $region8
  $region5: #{down_transition.3} parent=0 // loop_body
    %s13 = ssub.s32 %s8, 1
    %s14 = ssub.s32 %s8, 2
    %s24 = sadd.s32 1, %s17
    %p25 = scmp.ge.s32.totalorder %s24, 1
    %s26 = scalar_select %p25, 0, %s24
    %s27 = sadd.s32 1, %s16
    %s28 = scalar_select %p25, %s27, %s16
    %p29 = scmp.ge.s32.totalorder %s28, 1
    %s30 = scalar_select %p29, 0, %s28
    %s31 = sadd.s32 1, %s15
    %s32 = scalar_select %p29, %s31, %s15
    %p33 = scmp.ge.s32.totalorder %s32, 2
    %s34 = scalar_select %p33, 0, %s32
    %s35 = ssub.s32 %s15, %s34
    %s36 = ssub.s32 %s16, %s30
    %s37 = sor.u32 %s35, %s36
    %p38 = scmp.eq.s32.totalorder %s37, 0
    %s40 = sadd.s32 %s39, 1
    %s41 = scalar_select %p38, %s39, %s40
    %p44 = pneg %p38
    %p45 = scmp.eq.s32.totalorder %s8, 1
    %p46 = por %p44, %p45
    %p47 = scmp.ne.s32.totalorder %s39, %s42
    %p48 = scmp.eq.s32.totalorder %s8, 0
    %p49 = por %p47, %p48
    %p50 = scmp.ne.s32.totalorder %s39, %s42
    %p51 = scmp.eq.s32.totalorder %s13, 1
    %p52 = por %p50, %p51
    %p53 = scmp.ne.s32.totalorder %s42, %s43
    %p54 = scmp.eq.s32.totalorder %s13, 0
    %p55 = por %p53, %p54
    %p56 = scmp.ne.s32.totalorder %s42, %s43
    %p57 = scmp.eq.s32.totalorder %s14, 1
    %p58 = por %p56, %p57
    %p60 = scmp.ne.s32.totalorder %s43, %s59
    %p61 = scmp.eq.s32.totalorder %s14, 0
    %p62 = por %p60, %p61
    %s63 = ssub.s32 %s15, %s34
    %s64 = ssub.s32 %s17, %s26
    %s65 = sor.u32 %s63, %s64
    %p66 = scmp.eq.s32.totalorder %s65, 0
    %s68 = sadd.s32 %s67, 1
    %s69 = scalar_select %p66, %s67, %s68
    %p72 = pneg %p66
    %p73 = scmp.eq.s32.totalorder %s8, 1
    %p74 = por %p72, %p73
    %p75 = scmp.ne.s32.totalorder %s67, %s70
    %p76 = scmp.eq.s32.totalorder %s8, 0
    %p77 = por %p75, %p76
    %p78 = scmp.ne.s32.totalorder %s67, %s70
    %p79 = scmp.eq.s32.totalorder %s13, 1
    %p80 = por %p78, %p79
    %p81 = scmp.ne.s32.totalorder %s70, %s71
    %p82 = scmp.eq.s32.totalorder %s13, 0
    %p83 = por %p81, %p82
    %p84 = scmp.ne.s32.totalorder %s70, %s71
    %p85 = scmp.eq.s32.totalorder %s14, 1
    %p86 = por %p84, %p85
    %p88 = scmp.ne.s32.totalorder %s71, %s87
    %p89 = scmp.eq.s32.totalorder %s14, 0
    %p90 = por %p88, %p89
    %s91 = ssub.s32 %s15, %s34
    %s92 = ssub.s32 %s16, %s30
    %s93 = sor.u32 %s91, %s92
    %p94 = scmp.eq.s32.totalorder %s93, 0
    %s96 = sadd.s32 %s95, 1
    %s97 = scalar_select %p94, %s95, %s96
    %p100 = pneg %p94
    %p101 = scmp.eq.s32.totalorder %s8, 1
    %p102 = por %p100, %p101
    %p103 = scmp.ne.s32.totalorder %s95, %s98
    %p104 = scmp.eq.s32.totalorder %s8, 0
    %p105 = por %p103, %p104
    %p106 = scmp.ne.s32.totalorder %s95, %s98
    %p107 = scmp.eq.s32.totalorder %s13, 1
    %p108 = por %p106, %p107
    %p109 = scmp.ne.s32.totalorder %s98, %s99
    %p110 = scmp.eq.s32.totalorder %s13, 0
    %p111 = por %p109, %p110
    %p112 = scmp.ne.s32.totalorder %s98, %s99
    %p113 = scmp.eq.s32.totalorder %s14, 1
    %p114 = por %p112, %p113
    %p116 = scmp.ne.s32.totalorder %s99, %s115
    %p117 = scmp.eq.s32.totalorder %s14, 0
    %p118 = por %p116, %p117
    %p119 = scmp.le.s32.totalorder 1, %s8
    %p120 = scmp.lt.s32.totalorder %s8, 3
    %p121 = pnand %p119, %p120
    %p122 = pneg %p121
    // Predicated region
    $region9: #{down_transition.3} parent=5 // pred_check
      _
    $region10: #{down_transition.3} parent=5 // pred_check_branch
      %124 = sbr.rel (%p121) target = $region12
    $region11: #{down_transition.3} parent=5 // pred_region
      %s125 = ssub.s32 %s8, 1
    $region12: #{down_transition.3} parent=5 // pred_fallthru
      _
    %p126 = scmp.lt.s32.totalorder %s8, 2
    // Predicated region
    $region13: #{down_transition.3} parent=5 // pred_check
      %p127 = pneg %p126
    $region14: #{down_transition.3} parent=5 // pred_check_branch
      %129 = sbr.rel (%p127) target = $region16
    $region15: #{down_transition.3} parent=5 // pred_region
      // Predicated region
      $region17: #{down_transition.3} parent=15 // pred_check
        %p130 = pneg %p49
      $region18: #{down_transition.3} parent=15 // pred_check_branch
        %132 = sbr.rel (%p130) target = $region20
      $region19: #{down_transition.3} parent=15 // pred_region
        %p133 = scmp.lt.s32.totalorder %s15, 1
        %s134 = scalar_select %p133, %s15, 1
        %p135 = scmp.lt.s32.totalorder %s16, 0
        %s136 = scalar_select %p135, %s16, 0
        %s137 = sadd.s32 %s136, %s134
        %s138 = smul.addr %s137, 8
        %s139 = scalar_lea.vmem %s0, %s138
      $region20: #{down_transition.3} parent=15 // pred_fallthru
        _
      // Predicated region
      $region21: #{down_transition.3} parent=15 // pred_check
        %p140 = pneg %p77
      $region22: #{down_transition.3} parent=15 // pred_check_branch
        %142 = sbr.rel (%p140) target = $region24
      $region23: #{down_transition.3} parent=15 // pred_region
        %p143 = scmp.lt.s32.totalorder %s15, 1
        %s144 = scalar_select %p143, %s15, 1
        %p145 = scmp.lt.s32.totalorder %s17, 0
        %s146 = scalar_select %p145, %s17, 0
        %s147 = sadd.s32 %s146, %s144
        %s148 = smul.addr %s147, 8
        %s149 = scalar_lea.vmem %s1, %s148
      $region24: #{down_transition.3} parent=15 // pred_fallthru
        _
    $region16: #{down_transition.3} parent=5 // pred_fallthru
      _
    %p150 = scmp.le.s32.totalorder 1, %s8
    %p151 = scmp.lt.s32.totalorder %s8, 3
    %p152 = pnand %p150, %p151
    %p153 = pneg %p152
    // Predicated region
    $region25: #{down_transition.3} parent=5 // pred_check
      _
    $region26: #{down_transition.3} parent=5 // pred_check_branch
      %155 = sbr.rel (%p152) target = $region28
    $region27: #{down_transition.3} parent=5 // pred_region
      %s156 = ssub.s32 %s8, 1
      %p157 = scmp.lt.s32.totalorder %s18, 1
      %s158 = scalar_select %p157, %s18, 1
      %p159 = scmp.lt.s32.totalorder %s19, 0
      %s160 = scalar_select %p159, %s19, 0
      %s161 = sadd.s32 %s160, %s158
      %s162 = smul.addr %s161, 8
      %s163 = scalar_lea.vmem %s0, %s162
      %p164 = pneg %p55
      %p165 = pneg %p52
      %p166 = scmp.lt.s32.totalorder %s18, 1
      %s167 = scalar_select %p166, %s18, 1
      %p168 = scmp.lt.s32.totalorder %s20, 0
      %s169 = scalar_select %p168, %s20, 0
      %s170 = sadd.s32 %s169, %s167
      %s171 = smul.addr %s170, 8
      %s172 = scalar_lea.vmem %s1, %s171
      %p173 = pneg %p83
      %p174 = pneg %p80
      %p175 = pneg %p111
      %p176 = pneg %p108
      %p177 = scmp.lt.s32.totalorder %s18, 1
      %s178 = scalar_select %p177, %s18, 1
      %p179 = scmp.lt.s32.totalorder %s19, 0
      %s180 = scalar_select %p179, %s19, 0
      %s181 = sadd.s32 %s180, %s178
      %s182 = smul.addr %s181, 8
      %s183 = scalar_lea.vmem %s2, %s182
      %p184 = scmp.lt.s32.totalorder %s18, 1
      %s185 = scalar_select %p184, %s18, 1
      %p186 = scmp.lt.s32.totalorder %s19, 0
      %s187 = scalar_select %p186, %s19, 0
      %s188 = sadd.s32 %s187, %s185
      %s189 = smul.addr %s188, 8
      %s190 = scalar_lea.vmem %s0, %s189
      %p191 = scmp.lt.s32.totalorder %s18, 1
      %s192 = scalar_select %p191, %s18, 1
      %p193 = scmp.lt.s32.totalorder %s20, 0
      %s194 = scalar_select %p193, %s20, 0
      %s195 = sadd.s32 %s194, %s192
      %s196 = smul.addr %s195, 8
      %s197 = scalar_lea.vmem %s1, %s196
      %p198 = scmp.lt.s32.totalorder %s18, 1
      %s199 = scalar_select %p198, %s18, 1
      %p200 = scmp.lt.s32.totalorder %s19, 0
      %s201 = scalar_select %p200, %s19, 0
      %s202 = sadd.s32 %s201, %s199
      %s203 = smul.addr %s202, 8
      %s204 = scalar_lea.vmem %s2, %s203
      %p205 = scmp.eq.s32.totalorder %s20, 0
      // Predicated region
      $region29: #{down_transition.3} parent=27 // pred_check
        %p206 = pneg %p205
      $region30: #{down_transition.3} parent=27 // pred_check_branch
        %208 = sbr.rel (%p206) target = $region32
      $region31: #{down_transition.3} parent=27 // pred_region
        %vm209 = vcmask 64512
        %210 = vst.msk [vmem:[#allocation2] sm:$0xff] %vm209, inf
        %v211 = vlaneseq
        %v212 = vand.u32 %v211, 127
        %v213 = vadd.s32 %v212, 128
        %214 = vst.msk [vmem:[#allocation3] sm:$0xff] %vm209, %v213
      $region32: #{down_transition.3} parent=27 // pred_fallthru
        _
      %v215 = vld [vmem:[%s190] sm:$0xff]
      %v216 = vld [vmem:[%s197] sm:$0xff]
      %vm217 = vcmask 64512
      %v219 = vsel %vm217, %v215, 0
      %221 = vmatprep.subr.mxu0 0.0
      %222 = vmatpush1.msra.mxu0 0.0
      %223 = vmatprep.subr.mxu0 0.0
      %224 = vmatpush1.msra.mxu0 0.0
      %225 = vmatprep.subr.mxu0 0.0
      %226 = vmatpush1.msra.mxu0 0.0
      %227 = vmatprep.subr.mxu0 0.0
      %228 = vmatpush1.msra.mxu0 0.0
      %229 = vmatprep.subr.mxu0 0.0
      %230 = vmatpush1.msra.mxu0 0.0
      %231 = vmatprep.subr.mxu0 0.0
      %232 = vmatpush1.msra.mxu0 0.0
      %233 = vmatprep.subr.mxu0 0.0
      %234 = vmatpush1.msra.mxu0 0.0
      %235 = vmatprep.subr.mxu0 0.0
      %236 = vmatpush1.msra.mxu0 0.0
      %237 = vmatprep.subr.mxu0 0.0
      %238 = vmatpush1.msra.mxu0 0.0
      %239 = vmatprep.subr.mxu0 0.0
      %240 = vmatpush1.msra.mxu0 0.0
      %241 = vmatprep.subr.mxu0 0.0
      %242 = vmatpush1.msra.mxu0 0.0
      %243 = vmatprep.subr.mxu0 0.0
      %244 = vmatpush1.msra.mxu0 0.0
      %245 = vmatprep.subr.mxu0 0.0
      %246 = vmatpush1.msra.mxu0 0.0
      %247 = vmatprep.subr.mxu0 0.0
      %248 = vmatpush1.msra.mxu0 0.0
      %249 = vmatprep.subr.mxu0 0.0
      %250 = vmatpush1.msra.mxu0 0.0
      %251 = vmatprep.subr.mxu0 0.0
      %252 = vmatpush1.msra.mxu0 %v216
      %253 = vmatprep.subr.mxu0 0.0
      %254 = vmatpush2.msra.mxu0 0.0
      %255 = vmatprep.subr.mxu0 0.0
      %256 = vmatpush2.msra.mxu0 0.0
      %257 = vmatprep.subr.mxu0 0.0
      %258 = vmatpush2.msra.mxu0 0.0
      %259 = vmatprep.subr.mxu0 0.0
      %260 = vmatpush2.msra.mxu0 0.0
      %261 = vmatprep.subr.mxu0 0.0
      %262 = vmatpush2.msra.mxu0 0.0
      %263 = vmatprep.subr.mxu0 0.0
      %264 = vmatpush2.msra.mxu0 0.0
      %265 = vmatprep.subr.mxu0 0.0
      %266 = vmatpush2.msra.mxu0 0.0
      %267 = vmatprep.subr.mxu0 0.0
      %268 = vmatpush2.msra.mxu0 0.0
      %269 = vmatprep.subr.mxu0 0.0
      %270 = vmatpush2.msra.mxu0 0.0
      %271 = vmatprep.subr.mxu0 0.0
      %272 = vmatpush2.msra.mxu0 0.0
      %273 = vmatprep.subr.mxu0 0.0
      %274 = vmatpush2.msra.mxu0 0.0
      %275 = vmatprep.subr.mxu0 0.0
      %276 = vmatpush2.msra.mxu0 0.0
      %277 = vmatprep.subr.mxu0 0.0
      %278 = vmatpush2.msra.mxu0 0.0
      %279 = vmatprep.subr.mxu0 0.0
      %280 = vmatpush2.msra.mxu0 0.0
      %281 = vmatprep.subr.mxu0 0.0
      %282 = vmatpush2.msra.mxu0 0.0
      %283 = vmatprep.subr.mxu0 0.0
      %284 = vmatpush2.msra.mxu0 0.0
      %285 = vmatprep.mubr.f32.mxu0 0.0
      %286 = vmatmul.mubr.f32.gmra.mxu0 %v219
      %v287 = vpop.f32.mrf.mxu0
      %v288 = vadd.f32 0.0, %v287
      %v289 = vpop.f32.mrf.mxu0
      %290 = vdwg.mxu0
      %v291 = vmul.f32 %v215, %v215
      %v292 = vsel %vm217, %v291, 0.0
      %293 = vadd.xlane.f32.xlu0 %v292
      %v294 = vpop.xlane.xlu0 %293
      %v295 = vmul.f32 %v216, %v216
      %v296 = vrot.slane %v295, 4
      %v297 = vadd.f32 %v295, %v296
      %v298 = vrot.slane %v297, 2
      %v299 = vadd.f32 %v297, %v298
      %v300 = vrot.slane %v299, 1
      %v301 = vadd.f32 %v299, %v300
      %v302 = vadd.f32 %v294, %v301
      %v303 = vmul.f32 %v288, 2.0
      %v304 = vsub.f32 %v302, %v303
      %s305 = smul.u32 %s20, 128
      %v306 = vlaneseq
      %v307 = vand.u32 %v306, 127
      %v308 = vstv %s305
      %v309 = vadd.s32 %v308, %v307
      %v310 = vcvt.s32.f32 %v309
      %vm311 = vcmp.lt.s32.totalorder %v309, 16
      %v312 = vsel %vm311, %v304, inf
      %v313 = vld [vmem:[#allocation2] sm:$0xff]
      %v314 = vld [vmem:[#allocation3] sm:$0xff]
      %v315 = vcvt.s32.f32 %v314
      %v316 = vsel %vm217, %v313, inf
      %317 = vmin.xlane.f32.xlu0 %v316
      %v318 = vpop.xlane.xlu0 %317
      %319 = vmin.xlane.f32.xlu0 %v312
      %v320 = vpop.xlane.xlu0 %319
      %vm321 = vcmp.le.f32.partialorder %v318, %v320
      %vm322 = vcmp.eq.f32.partialorder %v313, %v318
      %v323 = vsel %vm322, %v315, 1e+30
      %v324 = vsel %vm217, %v323, inf
      %325 = vmin.xlane.f32.xlu0 %v324
      %v326 = vpop.xlane.xlu0 %325
      %vm327 = vcmp.eq.f32.partialorder %v312, %v320
      %v328 = vsel %vm327, %v310, 1e+30
      %329 = vmin.xlane.f32.xlu0 %v328
      %v330 = vpop.xlane.xlu0 %329
      %v331 = vmin.f32 %v318, %v320
      %v332 = vsel %vm321, %v326, %v330
      %vm333 = vcmp.eq.f32.partialorder %v315, %v326
      %v334 = vsel %vm321, 1, 0
      %vm335 = vcmp.eq.s32.totalorder %v334, 1
      %vm336 = vmand %vm335, %vm333
      %v337 = vsel %vm336, inf, %v313
      %vm338 = vmxor %vm321, 1
      %vm339 = vcmp.eq.f32.partialorder %v310, %v330
      %v340 = vsel %vm338, 1, 0
      %vm341 = vcmp.eq.s32.totalorder %v340, 1
      %vm342 = vmand %vm341, %vm339
      %v343 = vsel %vm342, inf, %v312
      %vm344 = vcmp.eq.s32.totalorder %v307, 0
      %v345 = vsel %vm344, %v331, 0.0
      %v346 = vsel %vm344, %v332, 0.0
      %v347 = vsel %vm217, %v337, inf
      %348 = vmin.xlane.f32.xlu0 %v347
      %v349 = vpop.xlane.xlu0 %348
      %350 = vmin.xlane.f32.xlu0 %v343
      %v351 = vpop.xlane.xlu0 %350
      %vm352 = vcmp.le.f32.partialorder %v349, %v351
      %vm353 = vcmp.eq.f32.partialorder %v337, %v349
      %v354 = vsel %vm353, %v315, 1e+30
      %v355 = vsel %vm217, %v354, inf
      %356 = vmin.xlane.f32.xlu0 %v355
      %v357 = vpop.xlane.xlu0 %356
      %vm358 = vcmp.eq.f32.partialorder %v343, %v351
      %v359 = vsel %vm358, %v310, 1e+30
      %360 = vmin.xlane.f32.xlu0 %v359
      %v361 = vpop.xlane.xlu0 %360
      %v362 = vmin.f32 %v349, %v351
      %v363 = vsel %vm352, %v357, %v361
      %vm364 = vcmp.eq.f32.partialorder %v315, %v357
      %v365 = vsel %vm352, 1, 0
      %vm366 = vcmp.eq.s32.totalorder %v365, 1
      %vm367 = vmand %vm366, %vm364
      %v368 = vsel %vm367, inf, %v337
      %vm369 = vmxor %vm352, 1
      %vm370 = vcmp.eq.f32.partialorder %v310, %v361
      %v371 = vsel %vm369, 1, 0
      %vm372 = vcmp.eq.s32.totalorder %v371, 1
      %vm373 = vmand %vm372, %vm370
      %v374 = vsel %vm373, inf, %v343
      %vm375 = vcmp.eq.s32.totalorder %v307, 1
      %v376 = vsel %vm375, %v362, %v345
      %v377 = vsel %vm375, %v363, %v346
      %v378 = vsel %vm217, %v368, inf
      %379 = vmin.xlane.f32.xlu0 %v378
      %v380 = vpop.xlane.xlu0 %379
      %381 = vmin.xlane.f32.xlu0 %v374
      %v382 = vpop.xlane.xlu0 %381
      %vm383 = vcmp.le.f32.partialorder %v380, %v382
      %vm384 = vcmp.eq.f32.partialorder %v368, %v380
      %v385 = vsel %vm384, %v315, 1e+30
      %v386 = vsel %vm217, %v385, inf
      %387 = vmin.xlane.f32.xlu0 %v386
      %v388 = vpop.xlane.xlu0 %387
      %vm389 = vcmp.eq.f32.partialorder %v374, %v382
      %v390 = vsel %vm389, %v310, 1e+30
      %391 = vmin.xlane.f32.xlu0 %v390
      %v392 = vpop.xlane.xlu0 %391
      %v393 = vmin.f32 %v380, %v382
      %v394 = vsel %vm383, %v388, %v392
      %vm395 = vcmp.eq.f32.partialorder %v315, %v388
      %v396 = vsel %vm383, 1, 0
      %vm397 = vcmp.eq.s32.totalorder %v396, 1
      %vm398 = vmand %vm397, %vm395
      %v399 = vsel %vm398, inf, %v368
      %vm400 = vmxor %vm383, 1
      %vm401 = vcmp.eq.f32.partialorder %v310, %v392
      %v402 = vsel %vm400, 1, 0
      %vm403 = vcmp.eq.s32.totalorder %v402, 1
      %vm404 = vmand %vm403, %vm401
      %v405 = vsel %vm404, inf, %v374
      %vm406 = vcmp.eq.s32.totalorder %v307, 2
      %v407 = vsel %vm406, %v393, %v376
      %v408 = vsel %vm406, %v394, %v377
      %v409 = vsel %vm217, %v399, inf
      %410 = vmin.xlane.f32.xlu0 %v409
      %v411 = vpop.xlane.xlu0 %410
      %412 = vmin.xlane.f32.xlu0 %v405
      %v413 = vpop.xlane.xlu0 %412
      %vm414 = vcmp.le.f32.partialorder %v411, %v413
      %vm415 = vcmp.eq.f32.partialorder %v399, %v411
      %v416 = vsel %vm415, %v315, 1e+30
      %v417 = vsel %vm217, %v416, inf
      %418 = vmin.xlane.f32.xlu0 %v417
      %v419 = vpop.xlane.xlu0 %418
      %vm420 = vcmp.eq.f32.partialorder %v405, %v413
      %v421 = vsel %vm420, %v310, 1e+30
      %422 = vmin.xlane.f32.xlu0 %v421
      %v423 = vpop.xlane.xlu0 %422
      %v424 = vmin.f32 %v411, %v413
      %v425 = vsel %vm414, %v419, %v423
      %vm426 = vcmp.eq.f32.partialorder %v315, %v419
      %v427 = vsel %vm414, 1, 0
      %vm428 = vcmp.eq.s32.totalorder %v427, 1
      %vm429 = vmand %vm428, %vm426
      %v430 = vsel %vm429, inf, %v399
      %vm431 = vmxor %vm414, 1
      %vm432 = vcmp.eq.f32.partialorder %v310, %v423
      %v433 = vsel %vm431, 1, 0
      %vm434 = vcmp.eq.s32.totalorder %v433, 1
      %vm435 = vmand %vm434, %vm432
      %v436 = vsel %vm435, inf, %v405
      %vm437 = vcmp.eq.s32.totalorder %v307, 3
      %v438 = vsel %vm437, %v424, %v407
      %v439 = vsel %vm437, %v425, %v408
      %v440 = vsel %vm217, %v430, inf
      %441 = vmin.xlane.f32.xlu0 %v440
      %v442 = vpop.xlane.xlu0 %441
      %443 = vmin.xlane.f32.xlu0 %v436
      %v444 = vpop.xlane.xlu0 %443
      %vm445 = vcmp.le.f32.partialorder %v442, %v444
      %vm446 = vcmp.eq.f32.partialorder %v430, %v442
      %v447 = vsel %vm446, %v315, 1e+30
      %v448 = vsel %vm217, %v447, inf
      %449 = vmin.xlane.f32.xlu0 %v448
      %v450 = vpop.xlane.xlu0 %449
      %vm451 = vcmp.eq.f32.partialorder %v436, %v444
      %v452 = vsel %vm451, %v310, 1e+30
      %453 = vmin.xlane.f32.xlu0 %v452
      %v454 = vpop.xlane.xlu0 %453
      %v455 = vmin.f32 %v442, %v444
      %v456 = vsel %vm445, %v450, %v454
      %vm457 = vcmp.eq.f32.partialorder %v315, %v450
      %v458 = vsel %vm445, 1, 0
      %vm459 = vcmp.eq.s32.totalorder %v458, 1
      %vm460 = vmand %vm459, %vm457
      %v461 = vsel %vm460, inf, %v430
      %vm462 = vmxor %vm445, 1
      %vm463 = vcmp.eq.f32.partialorder %v310, %v454
      %v464 = vsel %vm462, 1, 0
      %vm465 = vcmp.eq.s32.totalorder %v464, 1
      %vm466 = vmand %vm465, %vm463
      %v467 = vsel %vm466, inf, %v436
      %vm468 = vcmp.eq.s32.totalorder %v307, 4
      %v469 = vsel %vm468, %v455, %v438
      %v470 = vsel %vm468, %v456, %v439
      %v471 = vsel %vm217, %v461, inf
      %472 = vmin.xlane.f32.xlu0 %v471
      %v473 = vpop.xlane.xlu0 %472
      %474 = vmin.xlane.f32.xlu0 %v467
      %v475 = vpop.xlane.xlu0 %474
      %vm476 = vcmp.le.f32.partialorder %v473, %v475
      %vm477 = vcmp.eq.f32.partialorder %v461, %v473
      %v478 = vsel %vm477, %v315, 1e+30
      %v479 = vsel %vm217, %v478, inf
      %480 = vmin.xlane.f32.xlu0 %v479
      %v481 = vpop.xlane.xlu0 %480
      %vm482 = vcmp.eq.f32.partialorder %v467, %v475
      %v483 = vsel %vm482, %v310, 1e+30
      %484 = vmin.xlane.f32.xlu0 %v483
      %v485 = vpop.xlane.xlu0 %484
      %v486 = vmin.f32 %v473, %v475
      %v487 = vsel %vm476, %v481, %v485
      %vm488 = vcmp.eq.f32.partialorder %v315, %v481
      %v489 = vsel %vm476, 1, 0
      %vm490 = vcmp.eq.s32.totalorder %v489, 1
      %vm491 = vmand %vm490, %vm488
      %v492 = vsel %vm491, inf, %v461
      %vm493 = vmxor %vm476, 1
      %vm494 = vcmp.eq.f32.partialorder %v310, %v485
      %v495 = vsel %vm493, 1, 0
      %vm496 = vcmp.eq.s32.totalorder %v495, 1
      %vm497 = vmand %vm496, %vm494
      %v498 = vsel %vm497, inf, %v467
      %vm499 = vcmp.eq.s32.totalorder %v307, 5
      %v500 = vsel %vm499, %v486, %v469
      %v501 = vsel %vm499, %v487, %v470
      %v502 = vsel %vm217, %v492, inf
      %503 = vmin.xlane.f32.xlu0 %v502
      %v504 = vpop.xlane.xlu0 %503
      %505 = vmin.xlane.f32.xlu0 %v498
      %v506 = vpop.xlane.xlu0 %505
      %vm507 = vcmp.le.f32.partialorder %v504, %v506
      %vm508 = vcmp.eq.f32.partialorder %v492, %v504
      %v509 = vsel %vm508, %v315, 1e+30
      %v510 = vsel %vm217, %v509, inf
      %511 = vmin.xlane.f32.xlu0 %v510
      %v512 = vpop.xlane.xlu0 %511
      %vm513 = vcmp.eq.f32.partialorder %v498, %v506
      %v514 = vsel %vm513, %v310, 1e+30
      %515 = vmin.xlane.f32.xlu0 %v514
      %v516 = vpop.xlane.xlu0 %515
      %v517 = vmin.f32 %v504, %v506
      %v518 = vsel %vm507, %v512, %v516
      %vm519 = vcmp.eq.f32.partialorder %v315, %v512
      %v520 = vsel %vm507, 1, 0
      %vm521 = vcmp.eq.s32.totalorder %v520, 1
      %vm522 = vmand %vm521, %vm519
      %v523 = vsel %vm522, inf, %v492
      %vm524 = vmxor %vm507, 1
      %vm525 = vcmp.eq.f32.partialorder %v310, %v516
      %v526 = vsel %vm524, 1, 0
      %vm527 = vcmp.eq.s32.totalorder %v526, 1
      %vm528 = vmand %vm527, %vm525
      %v529 = vsel %vm528, inf, %v498
      %vm530 = vcmp.eq.s32.totalorder %v307, 6
      %v531 = vsel %vm530, %v517, %v500
      %v532 = vsel %vm530, %v518, %v501
      %v533 = vsel %vm217, %v523, inf
      %534 = vmin.xlane.f32.xlu0 %v533
      %v535 = vpop.xlane.xlu0 %534
      %536 = vmin.xlane.f32.xlu0 %v529
      %v537 = vpop.xlane.xlu0 %536
      %vm538 = vcmp.le.f32.partialorder %v535, %v537
      %vm539 = vcmp.eq.f32.partialorder %v523, %v535
      %v540 = vsel %vm539, %v315, 1e+30
      %v541 = vsel %vm217, %v540, inf
      %542 = vmin.xlane.f32.xlu0 %v541
      %v543 = vpop.xlane.xlu0 %542
      %vm544 = vcmp.eq.f32.partialorder %v529, %v537
      %v545 = vsel %vm544, %v310, 1e+30
      %546 = vmin.xlane.f32.xlu0 %v545
      %v547 = vpop.xlane.xlu0 %546
      %v548 = vmin.f32 %v535, %v537
      %v549 = vsel %vm538, %v543, %v547
      %vm550 = vcmp.eq.s32.totalorder %v307, 7
      %v551 = vsel %vm550, %v548, %v531
      %v552 = vsel %vm550, %v549, %v532
      %553 = vst.msk [vmem:[#allocation2] sm:$0xff] %vm217, %v551
      %v554 = vcvt.f32.s32.to.zero.pseudo %v552
      %555 = vst.msk [vmem:[#allocation3] sm:$0xff] %vm217, %v554
      // Predicated region
      $region33: #{down_transition.3} parent=27 // pred_check
        %p556 = pneg %p205
      $region34: #{down_transition.3} parent=27 // pred_check_branch
        %558 = sbr.rel (%p556) target = $region36
      $region35: #{down_transition.3} parent=27 // pred_region
        %v559 = vld [vmem:[#allocation3] sm:$0xff]
        %560 = vst.msk [vmem:[%s204] sm:$0xff] %vm217, %v559
      $region36: #{down_transition.3} parent=27 // pred_fallthru
        _
      %p561 = scmp.lt.s32.totalorder %s18, 1
      %s562 = scalar_select %p561, %s18, 1
      %p563 = scmp.lt.s32.totalorder %s19, 0
      %s564 = scalar_select %p563, %s19, 0
      %s565 = sadd.s32 %s564, %s562
      %s566 = smul.addr %s565, 8
      %s567 = scalar_lea.vmem %s2, %s566
      // Predicated region
      $region37: #{down_transition.3} parent=27 // pred_check
        %p568 = pneg %p108
      $region38: #{down_transition.3} parent=27 // pred_check_branch
        %570 = sbr.rel (%p568) target = $region40
      $region39: #{down_transition.3} parent=27 // pred_region
        _
      $region40: #{down_transition.3} parent=27 // pred_fallthru
        _
    $region28: #{down_transition.3} parent=5 // pred_fallthru
      _
    %p571 = scmp.le.s32.totalorder 2, %s8
    // Predicated region
    $region41: #{down_transition.3} parent=5 // pred_check
      %p572 = pneg %p571
    $region42: #{down_transition.3} parent=5 // pred_check_branch
      %574 = sbr.rel (%p572) target = $region44
    $region43: #{down_transition.3} parent=5 // pred_region
      %s575 = ssub.s32 %s8, 2
      // Predicated region
      $region45: #{down_transition.3} parent=43 // pred_check
        %p576 = pneg %p114
      $region46: #{down_transition.3} parent=43 // pred_check_branch
        %578 = sbr.rel (%p576) target = $region48
      $region47: #{down_transition.3} parent=43 // pred_region
        %p579 = scmp.lt.s32.totalorder %s21, 1
        %s580 = scalar_select %p579, %s21, 1
        %p581 = scmp.lt.s32.totalorder %s22, 0
        %s582 = scalar_select %p581, %s22, 0
        %s583 = sadd.s32 %s582, %s580
        %s584 = smul.addr %s583, 8
        %s585 = scalar_lea.vmem %s2, %s584
      $region48: #{down_transition.3} parent=43 // pred_fallthru
        _
    $region44: #{down_transition.3} parent=5 // pred_fallthru
      _
  $region6: #{down_transition.3} parent=0 // loop_footer
    %s12 = sadd.s32 1, %s8
  $region7: #{down_transition.3} parent=0 // loop_footer_branch
    %7 = sbr.rel target = $region3
  $region8: #{down_transition.3} parent=0 // loop_exit
    _

</llo_original>
